<compile_context>
chip_gen: v5e
topology: v5e:2x2
jax: 0.10.0
libtpu: 0.0.40
codegen_flags: <defaults>
</compile_context>

<pallas_src>
import functools

import jax
import jax.numpy as jnp
from jax import lax
from jax.experimental import pallas as pl
from jax.experimental.pallas import tpu as pltpu

LANE = 128      # lane width: channel / K padding granularity
M_ALIGN = 16    # row alignment (bf16 sublane packing)
TM_MAX = 512    # max rows per grid step


def _round_up(x, m):
    return (x + m - 1) // m * m


def _cdiv(a, b):
    return -(-a // b)


# ----------------------------------------------------------------------------
# Pallas kernel: fused  A[M,Kp] @ W[Kp,Cp] + bias  (+ optional tanh, + optional
# per-tile sum / sum-of-squares for BatchNorm statistics, taken in f32 before
# the bf16 output cast)
# ----------------------------------------------------------------------------
def _conv_mm_kernel(a_ref, b_ref, bias_ref, o_ref, *stat_refs, act, emit_stats):
    # bf16 x bf16 -> f32 accumulate on the MXU
    y = jnp.dot(a_ref[...], b_ref[...], preferred_element_type=jnp.float32)
    y = y + bias_ref[...]
    if act == "tanh":
        y = jnp.tanh(y)
    o_ref[...] = y.astype(o_ref.dtype)

    if emit_stats:
        sum_ref, sq_ref = stat_refs
        cp = y.shape[1]
        psum = jnp.sum(y, axis=0, keepdims=True)        # (1, Cp) f32
        psq = jnp.sum(y * y, axis=0, keepdims=True)     # (1, Cp) f32
        sum_ref[...] = jnp.broadcast_to(psum, (8, cp))
        sq_ref[...] = jnp.broadcast_to(psq, (8, cp))


def pallas_conv_mm(a, w_p, b_p, *, act="none", want_stats=False,
                   out_dtype=jnp.bfloat16):
    """a: [M, Kp] bf16, w_p: [Kp, Cp] bf16, b_p: [1, Cp] f32.
    Returns (y[M, Cp] out_dtype, stats) with stats = (sum[Cp], sumsq[Cp]) over the
    M real rows in f32, or None."""
    M, Kp = a.shape
    Kw, Cp = w_p.shape
    assert Kp == Kw
    if want_stats:
        # closed-form pad-row correction below relies on padded rows evaluating to `bias`
        assert act == "none"

    # Pad M only to the row alignment; pick tm so it divides padded M exactly
    # (at most n_m*M_ALIGN extra rows, never a full dead tile).
    Mp = _round_up(max(M, M_ALIGN), M_ALIGN)
    n_m = _cdiv(Mp, TM_MAX)
    tm = _round_up(_cdiv(Mp, n_m), M_ALIGN)
    Mp = n_m * tm
    if Mp != M:
        a = jnp.pad(a, ((0, Mp - M), (0, 0)))

    kernel = functools.partial(_conv_mm_kernel, act=act, emit_stats=want_stats)
    y_shape = jax.ShapeDtypeStruct((Mp, Cp), out_dtype)
    y_spec = pl.BlockSpec((tm, Cp), lambda i: (i, 0))
    if want_stats:
        out_shape = (y_shape,
                     jax.ShapeDtypeStruct((n_m * 8, Cp), jnp.float32),
                     jax.ShapeDtypeStruct((n_m * 8, Cp), jnp.float32))
        out_specs = [y_spec,
                     pl.BlockSpec((8, Cp), lambda i: (i, 0)),
                     pl.BlockSpec((8, Cp), lambda i: (i, 0))]
    else:
        out_shape = y_shape
        out_specs = y_spec

    res = pl.pallas_call(
        kernel,
        out_shape=out_shape,
        grid_spec=pltpu.PrefetchScalarGridSpec(
            num_scalar_prefetch=0,
            grid=(n_m,),
            in_specs=[
                pl.BlockSpec((tm, Kp), lambda i: (i, 0)),   # activations, pipelined over M
                pl.BlockSpec((Kp, Cp), lambda i: (0, 0)),   # weights, grid-invariant
                pl.BlockSpec((1, Cp), lambda i: (0, 0)),    # bias, grid-invariant
            ],
            out_specs=out_specs,
        ),
        compiler_params=pltpu.CompilerParams(dimension_semantics=("parallel",)),
    )(a, w_p, b_p)

    if want_stats:
        y, s1, s2 = res
        s1 = s1.reshape(n_m, 8, Cp)[:, 0, :].sum(axis=0)
        s2 = s2.reshape(n_m, 8, Cp)[:, 0, :].sum(axis=0)
        # padded (all-zero) A rows each evaluate to exactly `bias` (act == "none"):
        # subtract their closed-form contribution instead of masking in-kernel.
        pad_rows = float(Mp - M)
        bias = b_p[0]
        s1 = s1 - pad_rows * bias
        s2 = s2 - pad_rows * bias * bias
        return y[:M], (s1, s2)
    return res[:M], None


# ----------------------------------------------------------------------------
# NHWC im2col (fused slices + one concat; K padded to a lane multiple inside
# the same concat — no extra copy pass)
# ----------------------------------------------------------------------------
def im2col_nhwc(x, kh, kw, stride, pad_h, pad_w):
    x = x.astype(jnp.bfloat16)
    if pad_h != (0, 0) or pad_w != (0, 0):
        x = jnp.pad(x, ((0, 0), pad_h, pad_w, (0, 0)))
    N, Hp, Wp, C = x.shape
    Ho = (Hp - kh) // stride + 1
    Wo = (Wp - kw) // stride + 1
    cols = []
    for ki in range(kh):
        for kj in range(kw):
            cols.append(x[:, ki:ki + Ho * stride:stride, kj:kj + Wo * stride:stride, :])
    K = kh * kw * C
    Kp = _round_up(K, LANE)
    if Kp != K:
        cols.append(jnp.zeros((N, Ho, Wo, Kp - K), jnp.bfloat16))
    a = jnp.concatenate(cols, axis=-1).reshape(N * Ho * Wo, Kp)
    return a, (N, Ho, Wo)


# ----------------------------------------------------------------------------
# One-time parameter prep (pad + flatten + bf16 cast)
# ----------------------------------------------------------------------------
def prep_conv(w, b):
    """w: [Cout, Cin, kh, kw] (PyTorch Conv2d layout), b: [Cout]."""
    cout, cin, kh, kw = w.shape
    cp = _round_up(cout, LANE)
    K = kh * kw * cin
    Kp = _round_up(K, LANE)
    wf = jnp.transpose(w, (2, 3, 1, 0)).reshape(K, cout)          # (ki, kj, ci) -> co
    wp = jnp.zeros((Kp, cp), jnp.bfloat16).at[:K, :cout].set(wf.astype(jnp.bfloat16))
    bp = jnp.zeros((1, cp), jnp.float32).at[0, :cout].set(b)
    return {"w": wp, "b": bp, "cout": cout, "cp": cp, "kh": kh, "kw": kw}


def prep_convT(w, b):
    """w: [Cin, Cout, 4, 4] (PyTorch ConvTranspose2d layout), stride=2, padding=1.
    Decomposed into 4 sub-pixel phases (2x2 convs); the 4 phase weights are concatenated
    along the output axis so all phases run in one fused matmul: W_all[Kp, 4*Cp]."""
    cin, cout, _, _ = w.shape
    cp = _round_up(cout, LANE)
    K = 4 * cin
    Kp = _round_up(K, LANE)
    # output parity r -> ConvT kernel rows used by the 2x2 window taps (di=0, di=1)
    KH = ((3, 1), (2, 0))
    w_all = jnp.zeros((Kp, 4 * cp), jnp.bfloat16)
    b_all = jnp.zeros((1, 4 * cp), jnp.float32)
    for r in range(2):
        for s in range(2):
            taps = []
            for di in range(2):
                for dj in range(2):
                    taps.append(w[:, :, KH[r][di], KH[s][dj]])    # [cin, cout]
            wf = jnp.stack(taps, axis=0).reshape(K, cout)         # (di, dj, ci) -> co
            p = 2 * r + s
            w_all = w_all.at[:K, p * cp:p * cp + cout].set(wf.astype(jnp.bfloat16))
            b_all = b_all.at[0, p * cp:p * cp + cout].set(b)
    return {"w": w_all, "b": b_all, "cout": cout, "cp": cp}


# ----------------------------------------------------------------------------
# BatchNorm (training mode) scale/shift from fused (sum, sumsq) statistics
# ----------------------------------------------------------------------------
def bn_scale_shift(stats, count, gamma, beta, eps=1e-5):
    s1, s2 = stats
    C = gamma.shape[0]
    mean = s1[:C] / count
    var = jnp.maximum(s2[:C] / count - mean * mean, 0.0)          # biased variance
    scale = gamma * lax.rsqrt(var + eps)
    shift = beta - mean * scale
    return scale, shift


# ----------------------------------------------------------------------------
# Conv / ConvTranspose layer wrappers (NHWC in, NHWC out)
# ----------------------------------------------------------------------------
def conv_down(x_nhwc, cv, *, want_stats):
    """Conv2d(k=4, s=2, p=1), optional fused BN batch statistics."""
    a, nhw = im2col_nhwc(x_nhwc, cv["kh"], cv["kw"], 2, (1, 1), (1, 1))
    y, stats = pallas_conv_mm(a, cv["w"], cv["b"], act="none",
                              want_stats=want_stats, out_dtype=jnp.bfloat16)
    return y, nhw, stats


def conv_up_fused(x_nhwc, ct, *, act, bn):
    """ConvTranspose2d(k=4, s=2, p=1) as ONE fused 4-phase sub-pixel matmul.
    A single stride-1 2x2 im2col over the (1,1)x(1,1)-padded input gives (H+1)x(W+1)
    positions; phase (r, s) is the [r:r+H, s:s+W] row/col subset of the single result."""
    N, H, W, _ = x_nhwc.shape
    cp, cout = ct["cp"], ct["cout"]
    a, _ = im2col_nhwc(x_nhwc, 2, 2, 1, (1, 1), (1, 1))           # [N*(H+1)*(W+1), Kp]
    out_dtype = jnp.float32 if act == "tanh" else jnp.bfloat16
    y, _ = pallas_conv_mm(a, ct["w"], ct["b"], act=act, want_stats=False,
                          out_dtype=out_dtype)
    yr = y.reshape(N, H + 1, W + 1, 4, cp)
    # interleave: output pixel (2i+r, 2j+s) <- phase (r, s) at fused position (i+r, j+s)
    rows = []
    for r in range(2):
        ph = [yr[:, r:r + H, s:s + W, 2 * r + s, :cout] for s in range(2)]
        rows.append(jnp.stack(ph, axis=3).reshape(N, H, 2 * W, cout))
    up = jnp.stack(rows, axis=2).reshape(N, 2 * H, 2 * W, cout)
    if bn is not None:
        # training-mode BatchNorm applied in jnp; XLA fuses it with the interleave above
        gamma, beta = bn
        xf = up.astype(jnp.float32)
        mean = xf.mean(axis=(0, 1, 2))
        var = xf.var(axis=(0, 1, 2))                              # biased variance
        scale = gamma * lax.rsqrt(var + 1e-5)
        up = ((xf - mean) * scale + beta).astype(jnp.bfloat16)
    return up


# ----------------------------------------------------------------------------
# UnetSkipConnectionBlock parameters + forward
# ----------------------------------------------------------------------------
def init_unet_block(key, outer_nc, inner_nc, submodule=None,
                    outermost=False, innermost=False):
    k = jax.random.split(key, 4)
    std = 0.05
    blk = {"outermost": outermost, "innermost": innermost, "submodule": submodule}
    # downconv: Conv2d(outer_nc, inner_nc, 4, 2, 1), bias=True
    wd = jax.random.normal(k[0], (inner_nc, outer_nc, 4, 4), jnp.float32) * std
    bd = jax.random.normal(k[1], (inner_nc,), jnp.float32) * std
    blk["down"] = prep_conv(wd, bd)
    blk["down_raw"] = (wd, bd)
    if (not outermost) and (not innermost):
        blk["down_bn"] = (jnp.ones((inner_nc,), jnp.float32),
                          jnp.zeros((inner_nc,), jnp.float32))
    # upconv: ConvTranspose2d(inner_nc or inner_nc*2, outer_nc, 4, 2, 1), bias=True
    up_in = inner_nc if innermost else inner_nc * 2
    wu = jax.random.normal(k[2], (up_in, outer_nc, 4, 4), jnp.float32) * std
    bu = jax.random.normal(k[3], (outer_nc,), jnp.float32) * std
    blk["up"] = prep_convT(wu, bu)
    blk["up_raw"] = (wu, bu)
    if not outermost:
        blk["up_bn"] = (jnp.ones((outer_nc,), jnp.float32),
                        jnp.zeros((outer_nc,), jnp.float32))
    return blk


def unet_block_forward(blk, x):
    """x: [N, H, W, outer_nc] bf16 NHWC."""
    outermost, innermost = blk["outermost"], blk["innermost"]

    # ---- down path ----
    h = x if outermost else jnp.where(x >= 0, x, x * 0.2)         # LeakyReLU(0.2)
    cv = blk["down"]
    y, (N, Ho, Wo), stats = conv_down(h, cv, want_stats=("down_bn" in blk))
    h = y[:, :cv["cout"]]                                         # drop padded lanes early
    if "down_bn" in blk:
        scale, shift = bn_scale_shift(stats, float(N * Ho * Wo), *blk["down_bn"])
        h = (h.astype(jnp.float32) * scale + shift).astype(jnp.bfloat16)
    h = h.reshape(N, Ho, Wo, cv["cout"])

    # ---- submodule ----
    if not innermost:
        h = unet_block_forward(blk["submodule"], h)

    # ---- up path ----
    h = jnp.maximum(h, 0.0)                                       # ReLU
    if outermost:
        return conv_up_fused(h, blk["up"], act="tanh", bn=None)   # f32 output
    up = conv_up_fused(h, blk["up"], act="none", bn=blk["up_bn"])
    return jnp.concatenate([up, x], axis=-1)                      # torch.cat([model(x), x], 1)


def unet_forward(blk, x_nchw):
    x = jnp.transpose(x_nchw, (0, 2, 3, 1)).astype(jnp.bfloat16)  # NCHW -> NHWC once
    y = unet_block_forward(blk, x)                                # f32 (outermost tanh)
    return jnp.transpose(y, (0, 3, 1, 2))                         # NHWC -> NCHW once


# ----------------------------------------------------------------------------
# Pure-lax f32 reference (faithful PyTorch translation) for the in-script
# correctness check of the sub-pixel ConvT decomposition, BN and block wiring.
# ----------------------------------------------------------------------------
def _ref_conv(x, w, b):                        # Conv2d(k=4, s=2, p=1)
    y = lax.conv_general_dilated(x, w, (2, 2), [(1, 1), (1, 1)],
                                 dimension_numbers=("NCHW", "OIHW", "NCHW"))
    return y + b[None, :, None, None]


def _ref_convT(x, w, b):                       # ConvTranspose2d(k=4, s=2, p=1)
    wf = jnp.transpose(w, (1, 0, 2, 3))[:, :, ::-1, ::-1]
    y = lax.conv_general_dilated(x, wf, (1, 1), [(2, 2), (2, 2)],
                                 lhs_dilation=(2, 2),
                                 dimension_numbers=("NCHW", "OIHW", "NCHW"))
    return y + b[None, :, None, None]


def _ref_bn(x, gamma, beta, eps=1e-5):         # training-mode BatchNorm2d
    mean = x.mean(axis=(0, 2, 3), keepdims=True)
    var = x.var(axis=(0, 2, 3), keepdims=True)
    return ((x - mean) * lax.rsqrt(var + eps) * gamma[None, :, None, None]
            + beta[None, :, None, None])


def ref_block(blk, x):
    wd, bd = blk["down_raw"]
    wu, bu = blk["up_raw"]
    h = x if blk["outermost"] else jnp.where(x >= 0, x, 0.2 * x)
    h = _ref_conv(h, wd, bd)
    if "down_bn" in blk:
        h = _ref_bn(h, *blk["down_bn"])
    if not blk["innermost"]:
        h = ref_block(blk["submodule"], h)
    h = jnp.maximum(h, 0.0)
    h = _ref_convT(h, wu, bu)
    if blk["outermost"]:
        return jnp.tanh(h)
    h = _ref_bn(h, *blk["up_bn"])
    return jnp.concatenate([h, x], axis=1)


# ----------------------------------------------------------------------------
if __name__ == "__main__":
    key = jax.random.PRNGKey(0)
    kp, kx = jax.random.split(key)
    k1, k2, k3 = jax.random.split(kp, 3)

    # 3-level U-Net: outermost(4, 8) -> middle(8, 16) -> innermost(16, 32)
    inner = init_unet_block(k3, outer_nc=16, inner_nc=32, submodule=None, innermost=True)
    middle = init_unet_block(k2, outer_nc=8, inner_nc=16, submodule=inner)
    outer = init_unet_block(k1, outer_nc=4, inner_nc=8, submodule=middle, outermost=True)

    x = jax.random.normal(kx, (2, 4, 16, 16), jnp.float32)        # [N, C, H, W]

    fwd = jax.jit(lambda v: unet_forward(outer, v))
    out = jax.block_until_ready(fwd(x))
    assert out.shape == (2, 4, 16, 16), out.shape
    assert bool(jnp.all(jnp.isfinite(out)))

    # correctness check vs. a pure-lax reference (bf16 MXU path => loose tolerance)
    ref = jax.block_until_ready(jax.jit(lambda v: ref_block(outer, v))(x))
    max_err = float(jnp.max(jnp.abs(out - ref)))
    assert max_err < 0.25, f"max abs err vs reference: {max_err}"

    print("KERNEL_OK")
</pallas_src>

<mosaic_0001>
module attributes {stable_mosaic.version = 11 : i64} {
  func.func @_conv_mm_kernel(%arg0: i32, %arg1: memref<128x128xbf16, #tpu.memory_space<vmem>>, %arg2: memref<128x128xbf16, #tpu.memory_space<vmem>>, %arg3: memref<1x128xf32, #tpu.memory_space<vmem>>, %arg4: memref<128x128xbf16, #tpu.memory_space<vmem>>) attributes {dimension_semantics = [#tpu.dimension_semantics<parallel>], iteration_bounds = array<i64: 1>, scalar_prefetch = 0 : i64, scratch_operands = 0 : i64, tpu.core_type = #tpu.core_type<tc>, window_params = [{transform_indices = @transform_0, window_bounds = array<i64: 128, 128>}, {pipeline_mode = #tpu.pipeline_mode<synchronous>, transform_indices = @transform_1, window_bounds = array<i64: 128, 128>}, {pipeline_mode = #tpu.pipeline_mode<synchronous>, transform_indices = @transform_2, window_bounds = array<i64: 1, 128>}, {transform_indices = @transform_3, window_bounds = array<i64: 128, 128>}]} {
    %c0 = arith.constant 0 : index
    %c0_0 = arith.constant 0 : index
    %0 = vector.load %arg1[%c0, %c0_0] : memref<128x128xbf16, #tpu.memory_space<vmem>>, vector<128x128xbf16>
    %c0_1 = arith.constant 0 : index
    %c0_2 = arith.constant 0 : index
    %1 = vector.load %arg2[%c0_1, %c0_2] : memref<128x128xbf16, #tpu.memory_space<vmem>>, vector<128x128xbf16>
    %cst = arith.constant dense<0.000000e+00> : vector<128x128xf32>
    %2 = tpu.matmul %0, %1, %cst {dimension_numbers = #tpu.dot_dimension_numbers<[1], [0], [0], [1], [0, 0, 1, 1], [], []>} : vector<128x128xbf16>, vector<128x128xbf16>, vector<128x128xf32> -> vector<128x128xf32>
    %c0_3 = arith.constant 0 : index
    %c0_4 = arith.constant 0 : index
    %3 = vector.load %arg3[%c0_3, %c0_4] : memref<1x128xf32, #tpu.memory_space<vmem>>, vector<1x128xf32>
    %4 = vector.broadcast %3 : vector<1x128xf32> to vector<128x128xf32>
    %5 = arith.addf %2, %4 : vector<128x128xf32>
    %6 = arith.truncf %5 : vector<128x128xf32> to vector<128x128xbf16>
    %c0_5 = arith.constant 0 : index
    %c0_6 = arith.constant 0 : index
    %7 = vector.load %arg4[%c0_5, %c0_6] : memref<128x128xbf16, #tpu.memory_space<vmem>>, vector<128x128xbf16>
    tpu.vector_store %arg4[%c0_5, %c0_6], %6 {strides = array<i32>} : memref<128x128xbf16, #tpu.memory_space<vmem>>, vector<128x128xbf16>,
    return
  }
  func.func @transform_0(%arg0: i32) -> (i32, i32) {
    %c0_i32 = arith.constant 0 : i32
    %c0_i32_0 = arith.constant 0 : i32
    return %arg0, %c0_i32 : i32, i32
  }
  func.func @transform_1(%arg0: i32) -> (i32, i32) {
    %c0_i32 = arith.constant 0 : i32
    %c0_i32_0 = arith.constant 0 : i32
    %c0_i32_1 = arith.constant 0 : i32
    return %c0_i32, %c0_i32_0 : i32, i32
  }
  func.func @transform_2(%arg0: i32) -> (i32, i32) {
    %c0_i32 = arith.constant 0 : i32
    %c0_i32_0 = arith.constant 0 : i32
    %c0_i32_1 = arith.constant 0 : i32
    return %c0_i32, %c0_i32_0 : i32, i32
  }
  func.func @transform_3(%arg0: i32) -> (i32, i32) {
    %c0_i32 = arith.constant 0 : i32
    %c0_i32_0 = arith.constant 0 : i32
    return %arg0, %c0_i32 : i32, i32
  }
}

module attributes {stable_mosaic.version = 11 : i64} {
  func.func @_conv_mm_kernel(%arg0: i32, %arg1: memref<32x128xbf16, #tpu.memory_space<vmem>>, %arg2: memref<128x128xbf16, #tpu.memory_space<vmem>>, %arg3: memref<1x128xf32, #tpu.memory_space<vmem>>, %arg4: memref<32x128xbf16, #tpu.memory_space<vmem>>, %arg5: memref<8x128xf32, #tpu.memory_space<vmem>>, %arg6: memref<8x128xf32, #tpu.memory_space<vmem>>) attributes {dimension_semantics = [#tpu.dimension_semantics<parallel>], iteration_bounds = array<i64: 1>, scalar_prefetch = 0 : i64, scratch_operands = 0 : i64, tpu.core_type = #tpu.core_type<tc>, window_params = [{transform_indices = @transform_0, window_bounds = array<i64: 32, 128>}, {pipeline_mode = #tpu.pipeline_mode<synchronous>, transform_indices = @transform_1, window_bounds = array<i64: 128, 128>}, {pipeline_mode = #tpu.pipeline_mode<synchronous>, transform_indices = @transform_2, window_bounds = array<i64: 1, 128>}, {transform_indices = @transform_3, window_bounds = array<i64: 32, 128>}, {transform_indices = @transform_4, window_bounds = array<i64: 8, 128>}, {transform_indices = @transform_5, window_bounds = array<i64: 8, 128>}]} {
    %c0 = arith.constant 0 : index
    %c0_0 = arith.constant 0 : index
    %0 = vector.load %arg1[%c0, %c0_0] : memref<32x128xbf16, #tpu.memory_space<vmem>>, vector<32x128xbf16>
    %c0_1 = arith.constant 0 : index
    %c0_2 = arith.constant 0 : index
    %1 = vector.load %arg2[%c0_1, %c0_2] : memref<128x128xbf16, #tpu.memory_space<vmem>>, vector<128x128xbf16>
    %cst = arith.constant dense<0.000000e+00> : vector<32x128xf32>
    %2 = tpu.matmul %0, %1, %cst {dimension_numbers = #tpu.dot_dimension_numbers<[1], [0], [0], [1], [0, 0, 1, 1], [], []>} : vector<32x128xbf16>, vector<128x128xbf16>, vector<32x128xf32> -> vector<32x128xf32>
    %c0_3 = arith.constant 0 : index
    %c0_4 = arith.constant 0 : index
    %3 = vector.load %arg3[%c0_3, %c0_4] : memref<1x128xf32, #tpu.memory_space<vmem>>, vector<1x128xf32>
    %4 = vector.broadcast %3 : vector<1x128xf32> to vector<32x128xf32>
    %5 = arith.addf %2, %4 : vector<32x128xf32>
    %6 = arith.truncf %5 : vector<32x128xf32> to vector<32x128xbf16>
    %c0_5 = arith.constant 0 : index
    %c0_6 = arith.constant 0 : index
    %7 = vector.load %arg4[%c0_5, %c0_6] : memref<32x128xbf16, #tpu.memory_space<vmem>>, vector<32x128xbf16>
    tpu.vector_store %arg4[%c0_5, %c0_6], %6 {strides = array<i32>} : memref<32x128xbf16, #tpu.memory_space<vmem>>, vector<32x128xbf16>,
    %cst_7 = arith.constant dense<0.000000e+00> : vector<128xf32>
    %8 = vector.multi_reduction <add>, %5, %cst_7 [0] : vector<32x128xf32> to vector<128xf32>
    %9 = vector.shape_cast %8 : vector<128xf32> to vector<1x128xf32>
    %10 = arith.mulf %5, %5 : vector<32x128xf32>
    %cst_8 = arith.constant dense<0.000000e+00> : vector<128xf32>
    %11 = vector.multi_reduction <add>, %10, %cst_8 [0] : vector<32x128xf32> to vector<128xf32>
    %12 = vector.shape_cast %11 : vector<128xf32> to vector<1x128xf32>
    %13 = vector.shape_cast %9 : vector<1x128xf32> to vector<1x128xf32>
    %14 = vector.broadcast %13 : vector<1x128xf32> to vector<8x128xf32>
    %c0_9 = arith.constant 0 : index
    %c0_10 = arith.constant 0 : index
    %15 = vector.load %arg5[%c0_9, %c0_10] : memref<8x128xf32, #tpu.memory_space<vmem>>, vector<8x128xf32>
    tpu.vector_store %arg5[%c0_9, %c0_10], %14 {strides = array<i32>} : memref<8x128xf32, #tpu.memory_space<vmem>>, vector<8x128xf32>,
    %16 = vector.shape_cast %12 : vector<1x128xf32> to vector<1x128xf32>
    %17 = vector.broadcast %16 : vector<1x128xf32> to vector<8x128xf32>
    %c0_11 = arith.constant 0 : index
    %c0_12 = arith.constant 0 : index
    %18 = vector.load %arg6[%c0_11, %c0_12] : memref<8x128xf32, #tpu.memory_space<vmem>>, vector<8x128xf32>
    tpu.vector_store %arg6[%c0_11, %c0_12], %17 {strides = array<i32>} : memref<8x128xf32, #tpu.memory_space<vmem>>, vector<8x128xf32>,
    return
  }
  func.func @transform_0(%arg0: i32) -> (i32, i32) {
    %c0_i32 = arith.constant 0 : i32
    %c0_i32_0 = arith.constant 0 : i32
    return %arg0, %c0_i32 : i32, i32
  }
  func.func @transform_1(%arg0: i32) -> (i32, i32) {
    %c0_i32 = arith.constant 0 : i32
    %c0_i32_0 = arith.constant 0 : i32
    %c0_i32_1 = arith.constant 0 : i32
    return %c0_i32, %c0_i32_0 : i32, i32
  }
  func.func @transform_2(%arg0: i32) -> (i32, i32) {
    %c0_i32 = arith.constant 0 : i32
    %c0_i32_0 = arith.constant 0 : i32
    %c0_i32_1 = arith.constant 0 : i32
    return %c0_i32, %c0_i32_0 : i32, i32
  }
  func.func @transform_3(%arg0: i32) -> (i32, i32) {
    %c0_i32 = arith.constant 0 : i32
    %c0_i32_0 = arith.constant 0 : i32
    return %arg0, %c0_i32 : i32, i32
  }
  func.func @transform_4(%arg0: i32) -> (i32, i32) {
    %c0_i32 = arith.constant 0 : i32
    %c0_i32_0 = arith.constant 0 : i32
    return %arg0, %c0_i32 : i32, i32
  }
  func.func @transform_5(%arg0: i32) -> (i32, i32) {
    %c0_i32 = arith.constant 0 : i32
    %c0_i32_0 = arith.constant 0 : i32
    return %arg0, %c0_i32 : i32, i32
  }
}

module attributes {stable_mosaic.version = 11 : i64} {
  func.func @_conv_mm_kernel(%arg0: i32, %arg1: memref<16x256xbf16, #tpu.memory_space<vmem>>, %arg2: memref<256x128xbf16, #tpu.memory_space<vmem>>, %arg3: memref<1x128xf32, #tpu.memory_space<vmem>>, %arg4: memref<16x128xbf16, #tpu.memory_space<vmem>>) attributes {dimension_semantics = [#tpu.dimension_semantics<parallel>], iteration_bounds = array<i64: 1>, scalar_prefetch = 0 : i64, scratch_operands = 0 : i64, tpu.core_type = #tpu.core_type<tc>, window_params = [{transform_indices = @transform_0, window_bounds = array<i64: 16, 256>}, {pipeline_mode = #tpu.pipeline_mode<synchronous>, transform_indices = @transform_1, window_bounds = array<i64: 256, 128>}, {pipeline_mode = #tpu.pipeline_mode<synchronous>, transform_indices = @transform_2, window_bounds = array<i64: 1, 128>}, {transform_indices = @transform_3, window_bounds = array<i64: 16, 128>}]} {
    %c0 = arith.constant 0 : index
    %c0_0 = arith.constant 0 : index
    %0 = vector.load %arg1[%c0, %c0_0] : memref<16x256xbf16, #tpu.memory_space<vmem>>, vector<16x256xbf16>
    %c0_1 = arith.constant 0 : index
    %c0_2 = arith.constant 0 : index
    %1 = vector.load %arg2[%c0_1, %c0_2] : memref<256x128xbf16, #tpu.memory_space<vmem>>, vector<256x128xbf16>
    %cst = arith.constant dense<0.000000e+00> : vector<16x128xf32>
    %2 = tpu.matmul %0, %1, %cst {dimension_numbers = #tpu.dot_dimension_numbers<[1], [0], [0], [1], [0, 0, 1, 1], [], []>} : vector<16x256xbf16>, vector<256x128xbf16>, vector<16x128xf32> -> vector<16x128xf32>
    %c0_3 = arith.constant 0 : index
    %c0_4 = arith.constant 0 : index
    %3 = vector.load %arg3[%c0_3, %c0_4] : memref<1x128xf32, #tpu.memory_space<vmem>>, vector<1x128xf32>
    %4 = vector.broadcast %3 : vector<1x128xf32> to vector<16x128xf32>
    %5 = arith.addf %2, %4 : vector<16x128xf32>
    %6 = arith.truncf %5 : vector<16x128xf32> to vector<16x128xbf16>
    %c0_5 = arith.constant 0 : index
    %c0_6 = arith.constant 0 : index
    %7 = vector.load %arg4[%c0_5, %c0_6] : memref<16x128xbf16, #tpu.memory_space<vmem>>, vector<16x128xbf16>
    tpu.vector_store %arg4[%c0_5, %c0_6], %6 {strides = array<i32>} : memref<16x128xbf16, #tpu.memory_space<vmem>>, vector<16x128xbf16>,
    return
  }
  func.func @transform_0(%arg0: i32) -> (i32, i32) {
    %c0_i32 = arith.constant 0 : i32
    %c0_i32_0 = arith.constant 0 : i32
    return %arg0, %c0_i32 : i32, i32
  }
  func.func @transform_1(%arg0: i32) -> (i32, i32) {
    %c0_i32 = arith.constant 0 : i32
    %c0_i32_0 = arith.constant 0 : i32
    %c0_i32_1 = arith.constant 0 : i32
    return %c0_i32, %c0_i32_0 : i32, i32
  }
  func.func @transform_2(%arg0: i32) -> (i32, i32) {
    %c0_i32 = arith.constant 0 : i32
    %c0_i32_0 = arith.constant 0 : i32
    %c0_i32_1 = arith.constant 0 : i32
    return %c0_i32, %c0_i32_0 : i32, i32
  }
  func.func @transform_3(%arg0: i32) -> (i32, i32) {
    %c0_i32 = arith.constant 0 : i32
    %c0_i32_0 = arith.constant 0 : i32
    return %arg0, %c0_i32 : i32, i32
  }
}

module attributes {stable_mosaic.version = 11 : i64} {
  func.func @_conv_mm_kernel(%arg0: i32, %arg1: memref<32x128xbf16, #tpu.memory_space<vmem>>, %arg2: memref<128x512xbf16, #tpu.memory_space<vmem>>, %arg3: memref<1x512xf32, #tpu.memory_space<vmem>>, %arg4: memref<32x512xbf16, #tpu.memory_space<vmem>>) attributes {dimension_semantics = [#tpu.dimension_semantics<parallel>], iteration_bounds = array<i64: 1>, scalar_prefetch = 0 : i64, scratch_operands = 0 : i64, tpu.core_type = #tpu.core_type<tc>, window_params = [{transform_indices = @transform_0, window_bounds = array<i64: 32, 128>}, {pipeline_mode = #tpu.pipeline_mode<synchronous>, transform_indices = @transform_1, window_bounds = array<i64: 128, 512>}, {pipeline_mode = #tpu.pipeline_mode<synchronous>, transform_indices = @transform_2, window_bounds = array<i64: 1, 512>}, {transform_indices = @transform_3, window_bounds = array<i64: 32, 512>}]} {
    %c0 = arith.constant 0 : index
    %c0_0 = arith.constant 0 : index
    %0 = vector.load %arg1[%c0, %c0_0] : memref<32x128xbf16, #tpu.memory_space<vmem>>, vector<32x128xbf16>
    %c0_1 = arith.constant 0 : index
    %c0_2 = arith.constant 0 : index
    %1 = vector.load %arg2[%c0_1, %c0_2] : memref<128x512xbf16, #tpu.memory_space<vmem>>, vector<128x512xbf16>
    %cst = arith.constant dense<0.000000e+00> : vector<32x512xf32>
    %2 = tpu.matmul %0, %1, %cst {dimension_numbers = #tpu.dot_dimension_numbers<[1], [0], [0], [1], [0, 0, 1, 1], [], []>} : vector<32x128xbf16>, vector<128x512xbf16>, vector<32x512xf32> -> vector<32x512xf32>
    %c0_3 = arith.constant 0 : index
    %c0_4 = arith.constant 0 : index
    %3 = vector.load %arg3[%c0_3, %c0_4] : memref<1x512xf32, #tpu.memory_space<vmem>>, vector<1x512xf32>
    %4 = vector.broadcast %3 : vector<1x512xf32> to vector<32x512xf32>
    %5 = arith.addf %2, %4 : vector<32x512xf32>
    %6 = arith.truncf %5 : vector<32x512xf32> to vector<32x512xbf16>
    %c0_5 = arith.constant 0 : index
    %c0_6 = arith.constant 0 : index
    %7 = vector.load %arg4[%c0_5, %c0_6] : memref<32x512xbf16, #tpu.memory_space<vmem>>, vector<32x512xbf16>
    tpu.vector_store %arg4[%c0_5, %c0_6], %6 {strides = array<i32>} : memref<32x512xbf16, #tpu.memory_space<vmem>>, vector<32x512xbf16>,
    return
  }
  func.func @transform_0(%arg0: i32) -> (i32, i32) {
    %c0_i32 = arith.constant 0 : i32
    %c0_i32_0 = arith.constant 0 : i32
    return %arg0, %c0_i32 : i32, i32
  }
  func.func @transform_1(%arg0: i32) -> (i32, i32) {
    %c0_i32 = arith.constant 0 : i32
    %c0_i32_0 = arith.constant 0 : i32
    %c0_i32_1 = arith.constant 0 : i32
    return %c0_i32, %c0_i32_0 : i32, i32
  }
  func.func @transform_2(%arg0: i32) -> (i32, i32) {
    %c0_i32 = arith.constant 0 : i32
    %c0_i32_0 = arith.constant 0 : i32
    %c0_i32_1 = arith.constant 0 : i32
    return %c0_i32, %c0_i32_0 : i32, i32
  }
  func.func @transform_3(%arg0: i32) -> (i32, i32) {
    %c0_i32 = arith.constant 0 : i32
    %c0_i32_0 = arith.constant 0 : i32
    return %arg0, %c0_i32 : i32, i32
  }
}

module attributes {stable_mosaic.version = 11 : i64} {
  func.func @_conv_mm_kernel(%arg0: i32, %arg1: memref<64x128xbf16, #tpu.memory_space<vmem>>, %arg2: memref<128x512xbf16, #tpu.memory_space<vmem>>, %arg3: memref<1x512xf32, #tpu.memory_space<vmem>>, %arg4: memref<64x512xbf16, #tpu.memory_space<vmem>>) attributes {dimension_semantics = [#tpu.dimension_semantics<parallel>], iteration_bounds = array<i64: 1>, scalar_prefetch = 0 : i64, scratch_operands = 0 : i64, tpu.core_type = #tpu.core_type<tc>, window_params = [{transform_indices = @transform_0, window_bounds = array<i64: 64, 128>}, {pipeline_mode = #tpu.pipeline_mode<synchronous>, transform_indices = @transform_1, window_bounds = array<i64: 128, 512>}, {pipeline_mode = #tpu.pipeline_mode<synchronous>, transform_indices = @transform_2, window_bounds = array<i64: 1, 512>}, {transform_indices = @transform_3, window_bounds = array<i64: 64, 512>}]} {
    %c0 = arith.constant 0 : index
    %c0_0 = arith.constant 0 : index
    %0 = vector.load %arg1[%c0, %c0_0] : memref<64x128xbf16, #tpu.memory_space<vmem>>, vector<64x128xbf16>
    %c0_1 = arith.constant 0 : index
    %c0_2 = arith.constant 0 : index
    %1 = vector.load %arg2[%c0_1, %c0_2] : memref<128x512xbf16, #tpu.memory_space<vmem>>, vector<128x512xbf16>
    %cst = arith.constant dense<0.000000e+00> : vector<64x512xf32>
    %2 = tpu.matmul %0, %1, %cst {dimension_numbers = #tpu.dot_dimension_numbers<[1], [0], [0], [1], [0, 0, 1, 1], [], []>} : vector<64x128xbf16>, vector<128x512xbf16>, vector<64x512xf32> -> vector<64x512xf32>
    %c0_3 = arith.constant 0 : index
    %c0_4 = arith.constant 0 : index
    %3 = vector.load %arg3[%c0_3, %c0_4] : memref<1x512xf32, #tpu.memory_space<vmem>>, vector<1x512xf32>
    %4 = vector.broadcast %3 : vector<1x512xf32> to vector<64x512xf32>
    %5 = arith.addf %2, %4 : vector<64x512xf32>
    %6 = arith.truncf %5 : vector<64x512xf32> to vector<64x512xbf16>
    %c0_5 = arith.constant 0 : index
    %c0_6 = arith.constant 0 : index
    %7 = vector.load %arg4[%c0_5, %c0_6] : memref<64x512xbf16, #tpu.memory_space<vmem>>, vector<64x512xbf16>
    tpu.vector_store %arg4[%c0_5, %c0_6], %6 {strides = array<i32>} : memref<64x512xbf16, #tpu.memory_space<vmem>>, vector<64x512xbf16>,
    return
  }
  func.func @transform_0(%arg0: i32) -> (i32, i32) {
    %c0_i32 = arith.constant 0 : i32
    %c0_i32_0 = arith.constant 0 : i32
    return %arg0, %c0_i32 : i32, i32
  }
  func.func @transform_1(%arg0: i32) -> (i32, i32) {
    %c0_i32 = arith.constant 0 : i32
    %c0_i32_0 = arith.constant 0 : i32
    %c0_i32_1 = arith.constant 0 : i32
    return %c0_i32, %c0_i32_0 : i32, i32
  }
  func.func @transform_2(%arg0: i32) -> (i32, i32) {
    %c0_i32 = arith.constant 0 : i32
    %c0_i32_0 = arith.constant 0 : i32
    %c0_i32_1 = arith.constant 0 : i32
    return %c0_i32, %c0_i32_0 : i32, i32
  }
  func.func @transform_3(%arg0: i32) -> (i32, i32) {
    %c0_i32 = arith.constant 0 : i32
    %c0_i32_0 = arith.constant 0 : i32
    return %arg0, %c0_i32 : i32, i32
  }
}

module attributes {stable_mosaic.version = 11 : i64} {
  func.func @_conv_mm_kernel(%arg0: i32, %arg1: memref<176x128xbf16, #tpu.memory_space<vmem>>, %arg2: memref<128x512xbf16, #tpu.memory_space<vmem>>, %arg3: memref<1x512xf32, #tpu.memory_space<vmem>>, %arg4: memref<176x512xf32, #tpu.memory_space<vmem>>) attributes {dimension_semantics = [#tpu.dimension_semantics<parallel>], iteration_bounds = array<i64: 1>, scalar_prefetch = 0 : i64, scratch_operands = 0 : i64, tpu.core_type = #tpu.core_type<tc>, window_params = [{transform_indices = @transform_0, window_bounds = array<i64: 176, 128>}, {pipeline_mode = #tpu.pipeline_mode<synchronous>, transform_indices = @transform_1, window_bounds = array<i64: 128, 512>}, {pipeline_mode = #tpu.pipeline_mode<synchronous>, transform_indices = @transform_2, window_bounds = array<i64: 1, 512>}, {transform_indices = @transform_3, window_bounds = array<i64: 176, 512>}]} {
    %c0 = arith.constant 0 : index
    %c0_0 = arith.constant 0 : index
    %0 = vector.load %arg1[%c0, %c0_0] : memref<176x128xbf16, #tpu.memory_space<vmem>>, vector<176x128xbf16>
    %c0_1 = arith.constant 0 : index
    %c0_2 = arith.constant 0 : index
    %1 = vector.load %arg2[%c0_1, %c0_2] : memref<128x512xbf16, #tpu.memory_space<vmem>>, vector<128x512xbf16>
    %cst = arith.constant dense<0.000000e+00> : vector<176x512xf32>
    %2 = tpu.matmul %0, %1, %cst {dimension_numbers = #tpu.dot_dimension_numbers<[1], [0], [0], [1], [0, 0, 1, 1], [], []>} : vector<176x128xbf16>, vector<128x512xbf16>, vector<176x512xf32> -> vector<176x512xf32>
    %c0_3 = arith.constant 0 : index
    %c0_4 = arith.constant 0 : index
    %3 = vector.load %arg3[%c0_3, %c0_4] : memref<1x512xf32, #tpu.memory_space<vmem>>, vector<1x512xf32>
    %4 = vector.broadcast %3 : vector<1x512xf32> to vector<176x512xf32>
    %5 = arith.addf %2, %4 : vector<176x512xf32>
    %6 = math.tanh %5 : vector<176x512xf32>
    %c0_5 = arith.constant 0 : index
    %c0_6 = arith.constant 0 : index
    %7 = vector.load %arg4[%c0_5, %c0_6] : memref<176x512xf32, #tpu.memory_space<vmem>>, vector<176x512xf32>
    tpu.vector_store %arg4[%c0_5, %c0_6], %6 {strides = array<i32>} : memref<176x512xf32, #tpu.memory_space<vmem>>, vector<176x512xf32>,
    return
  }
  func.func @transform_0(%arg0: i32) -> (i32, i32) {
    %c0_i32 = arith.constant 0 : i32
    %c0_i32_0 = arith.constant 0 : i32
    return %arg0, %c0_i32 : i32, i32
  }
  func.func @transform_1(%arg0: i32) -> (i32, i32) {
    %c0_i32 = arith.constant 0 : i32
    %c0_i32_0 = arith.constant 0 : i32
    %c0_i32_1 = arith.constant 0 : i32
    return %c0_i32, %c0_i32_0 : i32, i32
  }
  func.func @transform_2(%arg0: i32) -> (i32, i32) {
    %c0_i32 = arith.constant 0 : i32
    %c0_i32_0 = arith.constant 0 : i32
    %c0_i32_1 = arith.constant 0 : i32
    return %c0_i32, %c0_i32_0 : i32, i32
  }
  func.func @transform_3(%arg0: i32) -> (i32, i32) {
    %c0_i32 = arith.constant 0 : i32
    %c0_i32_0 = arith.constant 0 : i32
    return %arg0, %c0_i32 : i32, i32
  }
}

</mosaic_0001>

<llo_original>
// kernel: _lambda_.6
$region0: #{_lambda_.6}
  #allocation0 [shape = 'u32[]', space=smem, size = 0x4, offset = 0x4, fixed_abs, tag = 'smem constant byte address 0x4 - core index']
  #allocation1 [shape = 'u32[72,128]{1,0:T(1,128)}', space=vmem, size = 0x9000, scoped, tag = 'internal scratch']
  %s0 = inlined_call_operand.vmem [shape: bf16[128,128], index: 0, kind: input, shape index: {}]
  %s1 = inlined_call_operand.vmem [shape: bf16[128,128], index: 1, kind: input, shape index: {}]
  %s2 = inlined_call_operand.vmem [shape: f32[1,128], index: 2, kind: input, shape index: {}]
  %s3 = inlined_call_operand.vmem [shape: bf16[128,128], index: 3, kind: output, shape index: {}]
  %s4 = sld [smem:[#allocation0]]
  $region22: #{_lambda_.6} parent=0
    _
  %s6 = ssub.s32 1, %s4
  %s7 = scalar_select 0, %s6, %s4
  // Predicated region
  $region2: #{_lambda_.6} parent=0 // pred_check
    _
  $region3: #{_lambda_.6} parent=0 // pred_check_branch
    %9 = sbr.rel (0) target = $region5
  $region4: #{_lambda_.6} parent=0 // pred_region
    _
  $region5: #{_lambda_.6} parent=0 // pred_fallthru
    _
  // Predicated region
  $region6: #{_lambda_.6} parent=0 // pred_check
    _
  $region7: #{_lambda_.6} parent=0 // pred_check_branch
    %11 = sbr.rel (0) target = $region9
  $region8: #{_lambda_.6} parent=0 // pred_region
    _
  $region9: #{_lambda_.6} parent=0 // pred_fallthru
    _
  // Predicated region
  $region10: #{_lambda_.6} parent=0 // pred_check
    _
  $region11: #{_lambda_.6} parent=0 // pred_check_branch
    %13 = sbr.rel (0) target = $region13
  $region12: #{_lambda_.6} parent=0 // pred_region
    _
  $region13: #{_lambda_.6} parent=0 // pred_fallthru
    _
  %v14 = vld [vmem:[%s0] sm:$0xf]
  %v15 = vld [vmem:[%s0 + $0x4] sm:$0xf]
  %v16 = vld [vmem:[%s0 + $0x8] sm:$0xf]
  %v17 = vld [vmem:[%s0 + $0xc] sm:$0xf]
  %v18 = vld [vmem:[%s0 + $0x10] sm:$0xf]
  %v19 = vld [vmem:[%s0 + $0x14] sm:$0xf]
  %v20 = vld [vmem:[%s0 + $0x18] sm:$0xf]
  %v21 = vld [vmem:[%s0 + $0x1c] sm:$0xf]
  %v22 = vld [vmem:[%s0 + $0x20] sm:$0xf]
  %v23 = vld [vmem:[%s0 + $0x24] sm:$0xf]
  %v24 = vld [vmem:[%s0 + $0x28] sm:$0xf]
  %v25 = vld [vmem:[%s0 + $0x2c] sm:$0xf]
  %v26 = vld [vmem:[%s0 + $0x30] sm:$0xf]
  %v27 = vld [vmem:[%s0 + $0x34] sm:$0xf]
  %v28 = vld [vmem:[%s0 + $0x38] sm:$0xf]
  %v29 = vld [vmem:[%s0 + $0x3c] sm:$0xf]
  %v30 = vld [vmem:[%s1] sm:$0xf]
  %v31 = vld [vmem:[%s1 + $0x4] sm:$0xf]
  %v32 = vld [vmem:[%s1 + $0x8] sm:$0xf]
  %v33 = vld [vmem:[%s1 + $0xc] sm:$0xf]
  %v34 = vld [vmem:[%s1 + $0x10] sm:$0xf]
  %v35 = vld [vmem:[%s1 + $0x14] sm:$0xf]
  %v36 = vld [vmem:[%s1 + $0x18] sm:$0xf]
  %v37 = vld [vmem:[%s1 + $0x1c] sm:$0xf]
  %v38 = vld [vmem:[%s1 + $0x20] sm:$0xf]
  %v39 = vld [vmem:[%s1 + $0x24] sm:$0xf]
  %v40 = vld [vmem:[%s1 + $0x28] sm:$0xf]
  %v41 = vld [vmem:[%s1 + $0x2c] sm:$0xf]
  %v42 = vld [vmem:[%s1 + $0x30] sm:$0xf]
  %v43 = vld [vmem:[%s1 + $0x34] sm:$0xf]
  %v44 = vld [vmem:[%s1 + $0x38] sm:$0xf]
  %v45 = vld [vmem:[%s1 + $0x3c] sm:$0xf]
  %v46 = vld [vmem:[%s2] sm:$0x1]
  %v48 = vperm.slane %v46, 0
  %v66 = vunpack.c.l.b16 %v14
  %v67 = vunpack.c.l.b16 %v15
  %v68 = vunpack.c.l.b16 %v16
  %v69 = vunpack.c.l.b16 %v17
  %v70 = vunpack.c.l.b16 %v18
  %v71 = vunpack.c.l.b16 %v19
  %v72 = vunpack.c.l.b16 %v20
  %v73 = vunpack.c.l.b16 %v21
  %v74 = vunpack.c.l.b16 %v22
  %v75 = vunpack.c.l.b16 %v23
  %v76 = vunpack.c.l.b16 %v24
  %v77 = vunpack.c.l.b16 %v25
  %v78 = vunpack.c.l.b16 %v26
  %v79 = vunpack.c.l.b16 %v27
  %v80 = vunpack.c.l.b16 %v28
  %v81 = vunpack.c.l.b16 %v29
  %v82 = vpack.c.b16 %v67, %v66
  %v83 = vpack.c.b16 %v69, %v68
  %v84 = vpack.c.b16 %v71, %v70
  %v85 = vpack.c.b16 %v73, %v72
  %v86 = vpack.c.b16 %v75, %v74
  %v87 = vpack.c.b16 %v77, %v76
  %v88 = vpack.c.b16 %v79, %v78
  %v89 = vpack.c.b16 %v81, %v80
  %v114 = vunpack.c.l.b16 %v30
  %v115 = vunpack.c.l.b16 %v31
  %v116 = vunpack.c.l.b16 %v32
  %v117 = vunpack.c.l.b16 %v33
  %v118 = vunpack.c.l.b16 %v34
  %v119 = vunpack.c.l.b16 %v35
  %v120 = vunpack.c.l.b16 %v36
  %v121 = vunpack.c.l.b16 %v37
  %v122 = vunpack.c.l.b16 %v38
  %v123 = vunpack.c.l.b16 %v39
  %v124 = vunpack.c.l.b16 %v40
  %v125 = vunpack.c.l.b16 %v41
  %v126 = vunpack.c.l.b16 %v42
  %v127 = vunpack.c.l.b16 %v43
  %v128 = vunpack.c.l.b16 %v44
  %v129 = vunpack.c.l.b16 %v45
  %v130 = vpack.c.b16 %v115, %v114
  %v131 = vpack.c.b16 %v117, %v116
  %v132 = vpack.c.b16 %v119, %v118
  %v133 = vpack.c.b16 %v121, %v120
  %v134 = vpack.c.b16 %v123, %v122
  %v135 = vpack.c.b16 %v125, %v124
  %v136 = vpack.c.b16 %v127, %v126
  %v137 = vpack.c.b16 %v129, %v128
  %146 = vmatpush.bf16.msra.mxu0 %v137
  %147 = vmatpush.bf16.msra.mxu0 %v136
  %148 = vmatpush.bf16.msra.mxu0 %v135
  %149 = vmatpush.bf16.msra.mxu0 %v134
  %150 = vmatpush.bf16.msra.mxu0 %v133
  %151 = vmatpush.bf16.msra.mxu0 %v132
  %152 = vmatpush.bf16.msra.mxu0 %v131
  %153 = vmatpush.bf16.msra.mxu0 %v130
  %154 = vmatmul.bf16.gmra.mxu0 %v82
  %v155 = vpop.f32.mrf.mxu0
  %v156 = vadd.f32 %v48, %v155
  %v157 = vpop.f32.mrf.mxu0
  %v158 = vadd.f32 %v48, %v157
  %159 = vmatmul.bf16.gmra.mxu0 %v83
  %v160 = vpop.f32.mrf.mxu0
  %v161 = vadd.f32 %v48, %v160
  %v162 = vpop.f32.mrf.mxu0
  %v163 = vadd.f32 %v48, %v162
  %164 = vmatmul.bf16.gmra.mxu0 %v84
  %v165 = vpop.f32.mrf.mxu0
  %v166 = vadd.f32 %v48, %v165
  %v167 = vpop.f32.mrf.mxu0
  %v168 = vadd.f32 %v48, %v167
  %169 = vmatmul.bf16.gmra.mxu0 %v85
  %v170 = vpop.f32.mrf.mxu0
  %v171 = vadd.f32 %v48, %v170
  %v172 = vpop.f32.mrf.mxu0
  %v173 = vadd.f32 %v48, %v172
  %174 = vmatmul.bf16.gmra.mxu0 %v86
  %v175 = vpop.f32.mrf.mxu0
  %v176 = vadd.f32 %v48, %v175
  %v177 = vpop.f32.mrf.mxu0
  %v178 = vadd.f32 %v48, %v177
  %179 = vmatmul.bf16.gmra.mxu0 %v87
  %v180 = vpop.f32.mrf.mxu0
  %v181 = vadd.f32 %v48, %v180
  %v182 = vpop.f32.mrf.mxu0
  %v183 = vadd.f32 %v48, %v182
  %184 = vmatmul.bf16.gmra.mxu0 %v88
  %v185 = vpop.f32.mrf.mxu0
  %v186 = vadd.f32 %v48, %v185
  %v187 = vpop.f32.mrf.mxu0
  %v188 = vadd.f32 %v48, %v187
  %189 = vmatmul.bf16.gmra.mxu0 %v89
  %v190 = vpop.f32.mrf.mxu0
  %v191 = vadd.f32 %v48, %v190
  %v192 = vpop.f32.mrf.mxu0
  %v193 = vadd.f32 %v48, %v192
  %194 = vdwg.mxu0
  %v195 = vpack.c.bf16 %v156, %v156
  %v196 = vpack.c.bf16 %v158, %v158
  %v197 = vpack.c.bf16 %v161, %v161
  %v198 = vpack.c.bf16 %v163, %v163
  %v199 = vpack.c.bf16 %v166, %v166
  %v200 = vpack.c.bf16 %v168, %v168
  %v201 = vpack.c.bf16 %v171, %v171
  %v202 = vpack.c.bf16 %v173, %v173
  %v203 = vpack.c.bf16 %v176, %v176
  %v204 = vpack.c.bf16 %v178, %v178
  %v205 = vpack.c.bf16 %v181, %v181
  %v206 = vpack.c.bf16 %v183, %v183
  %v207 = vpack.c.bf16 %v186, %v186
  %v208 = vpack.c.bf16 %v188, %v188
  %v209 = vpack.c.bf16 %v191, %v191
  %v210 = vpack.c.bf16 %v193, %v193
  %211 = vst [vmem:[%s3] sm:$0xf] %v195
  %212 = vst [vmem:[%s3 + $0x4] sm:$0xf] %v196
  %213 = vst [vmem:[%s3 + $0x8] sm:$0xf] %v197
  %214 = vst [vmem:[%s3 + $0xc] sm:$0xf] %v198
  %215 = vst [vmem:[%s3 + $0x10] sm:$0xf] %v199
  %216 = vst [vmem:[%s3 + $0x14] sm:$0xf] %v200
  %217 = vst [vmem:[%s3 + $0x18] sm:$0xf] %v201
  %218 = vst [vmem:[%s3 + $0x1c] sm:$0xf] %v202
  %219 = vst [vmem:[%s3 + $0x20] sm:$0xf] %v203
  %220 = vst [vmem:[%s3 + $0x24] sm:$0xf] %v204
  %221 = vst [vmem:[%s3 + $0x28] sm:$0xf] %v205
  %222 = vst [vmem:[%s3 + $0x2c] sm:$0xf] %v206
  %223 = vst [vmem:[%s3 + $0x30] sm:$0xf] %v207
  %224 = vst [vmem:[%s3 + $0x34] sm:$0xf] %v208
  %225 = vst [vmem:[%s3 + $0x38] sm:$0xf] %v209
  %226 = vst [vmem:[%s3 + $0x3c] sm:$0xf] %v210
  // Predicated region
  $region14: #{_lambda_.6} parent=0 // pred_check
    _
  $region15: #{_lambda_.6} parent=0 // pred_check_branch
    %228 = sbr.rel (0) target = $region17
  $region16: #{_lambda_.6} parent=0 // pred_region
    _
  $region17: #{_lambda_.6} parent=0 // pred_fallthru
    _
  // Predicated region
  $region18: #{_lambda_.6} parent=0 // pred_check
    _
  $region19: #{_lambda_.6} parent=0 // pred_check_branch
    %230 = sbr.rel (0) target = $region21
  $region20: #{_lambda_.6} parent=0 // pred_region
    _
  $region21: #{_lambda_.6} parent=0 // pred_fallthru
    _

// kernel: _lambda_.7
$region0: #{_lambda_.7}
  #allocation0 [shape = 'u32[]', space=smem, size = 0x4, offset = 0x4, fixed_abs, tag = 'smem constant byte address 0x4 - core index']
  #allocation1 [shape = 'u32[72,128]{1,0:T(1,128)}', space=vmem, size = 0x9000, scoped, tag = 'internal scratch']
  %s0 = inlined_call_operand.vmem [shape: bf16[32,128], index: 0, kind: input, shape index: {}]
  %s1 = inlined_call_operand.vmem [shape: bf16[128,128], index: 1, kind: input, shape index: {}]
  %s2 = inlined_call_operand.vmem [shape: f32[1,128], index: 2, kind: input, shape index: {}]
  %s3 = inlined_call_operand.vmem [shape: bf16[32,128], index: 3, kind: output, shape index: {0}]
  %s4 = inlined_call_operand.vmem [shape: f32[8,128], index: 4, kind: output, shape index: {1}]
  %s5 = inlined_call_operand.vmem [shape: f32[8,128], index: 5, kind: output, shape index: {2}]
  %6 = xla_tuple %s3, %s4, %s5
  %s7 = sld [smem:[#allocation0]]
  $region38: #{_lambda_.7} parent=0
    _
  %s9 = ssub.s32 1, %s7
  %s10 = scalar_select 0, %s9, %s7
  // Predicated region
  $region2: #{_lambda_.7} parent=0 // pred_check
    _
  $region3: #{_lambda_.7} parent=0 // pred_check_branch
    %12 = sbr.rel (0) target = $region5
  $region4: #{_lambda_.7} parent=0 // pred_region
    _
  $region5: #{_lambda_.7} parent=0 // pred_fallthru
    _
  // Predicated region
  $region6: #{_lambda_.7} parent=0 // pred_check
    _
  $region7: #{_lambda_.7} parent=0 // pred_check_branch
    %14 = sbr.rel (0) target = $region9
  $region8: #{_lambda_.7} parent=0 // pred_region
    _
  $region9: #{_lambda_.7} parent=0 // pred_fallthru
    _
  // Predicated region
  $region10: #{_lambda_.7} parent=0 // pred_check
    _
  $region11: #{_lambda_.7} parent=0 // pred_check_branch
    %16 = sbr.rel (0) target = $region13
  $region12: #{_lambda_.7} parent=0 // pred_region
    _
  $region13: #{_lambda_.7} parent=0 // pred_fallthru
    _
  %v17 = vld [vmem:[%s0] sm:$0xf]
  %v18 = vld [vmem:[%s0 + $0x4] sm:$0xf]
  %v19 = vld [vmem:[%s0 + $0x8] sm:$0xf]
  %v20 = vld [vmem:[%s0 + $0xc] sm:$0xf]
  %v21 = vld [vmem:[%s1] sm:$0xf]
  %v22 = vld [vmem:[%s1 + $0x4] sm:$0xf]
  %v23 = vld [vmem:[%s1 + $0x8] sm:$0xf]
  %v24 = vld [vmem:[%s1 + $0xc] sm:$0xf]
  %v25 = vld [vmem:[%s1 + $0x10] sm:$0xf]
  %v26 = vld [vmem:[%s1 + $0x14] sm:$0xf]
  %v27 = vld [vmem:[%s1 + $0x18] sm:$0xf]
  %v28 = vld [vmem:[%s1 + $0x1c] sm:$0xf]
  %v29 = vld [vmem:[%s1 + $0x20] sm:$0xf]
  %v30 = vld [vmem:[%s1 + $0x24] sm:$0xf]
  %v31 = vld [vmem:[%s1 + $0x28] sm:$0xf]
  %v32 = vld [vmem:[%s1 + $0x2c] sm:$0xf]
  %v33 = vld [vmem:[%s1 + $0x30] sm:$0xf]
  %v34 = vld [vmem:[%s1 + $0x34] sm:$0xf]
  %v35 = vld [vmem:[%s1 + $0x38] sm:$0xf]
  %v36 = vld [vmem:[%s1 + $0x3c] sm:$0xf]
  %v37 = vld [vmem:[%s2] sm:$0x1]
  %v39 = vperm.slane %v37, 0
  %v45 = vunpack.c.l.b16 %v17
  %v46 = vunpack.c.l.b16 %v18
  %v47 = vunpack.c.l.b16 %v19
  %v48 = vunpack.c.l.b16 %v20
  %v49 = vpack.c.b16 %v46, %v45
  %v50 = vpack.c.b16 %v48, %v47
  %v69 = vunpack.c.l.b16 %v21
  %v70 = vunpack.c.l.b16 %v22
  %v71 = vunpack.c.l.b16 %v23
  %v72 = vunpack.c.l.b16 %v24
  %v73 = vunpack.c.l.b16 %v25
  %v74 = vunpack.c.l.b16 %v26
  %v75 = vunpack.c.l.b16 %v27
  %v76 = vunpack.c.l.b16 %v28
  %v77 = vunpack.c.l.b16 %v29
  %v78 = vunpack.c.l.b16 %v30
  %v79 = vunpack.c.l.b16 %v31
  %v80 = vunpack.c.l.b16 %v32
  %v81 = vunpack.c.l.b16 %v33
  %v82 = vunpack.c.l.b16 %v34
  %v83 = vunpack.c.l.b16 %v35
  %v84 = vunpack.c.l.b16 %v36
  %v85 = vpack.c.b16 %v70, %v69
  %v86 = vpack.c.b16 %v72, %v71
  %v87 = vpack.c.b16 %v74, %v73
  %v88 = vpack.c.b16 %v76, %v75
  %v89 = vpack.c.b16 %v78, %v77
  %v90 = vpack.c.b16 %v80, %v79
  %v91 = vpack.c.b16 %v82, %v81
  %v92 = vpack.c.b16 %v84, %v83
  %101 = vmatpush.bf16.msra.mxu0 %v92
  %102 = vmatpush.bf16.msra.mxu0 %v91
  %103 = vmatpush.bf16.msra.mxu0 %v90
  %104 = vmatpush.bf16.msra.mxu0 %v89
  %105 = vmatpush.bf16.msra.mxu0 %v88
  %106 = vmatpush.bf16.msra.mxu0 %v87
  %107 = vmatpush.bf16.msra.mxu0 %v86
  %108 = vmatpush.bf16.msra.mxu0 %v85
  %109 = vmatmul.bf16.gmra.mxu0 %v49
  %v110 = vpop.f32.mrf.mxu0
  %v111 = vadd.f32 %v39, %v110
  %v112 = vpop.f32.mrf.mxu0
  %v113 = vadd.f32 %v39, %v112
  %114 = vmatmul.bf16.gmra.mxu0 %v50
  %v115 = vpop.f32.mrf.mxu0
  %v116 = vadd.f32 %v39, %v115
  %v117 = vpop.f32.mrf.mxu0
  %v118 = vadd.f32 %v39, %v117
  %119 = vdwg.mxu0
  %v120 = vpack.c.bf16 %v111, %v111
  %v121 = vpack.c.bf16 %v113, %v113
  %v122 = vpack.c.bf16 %v116, %v116
  %v123 = vpack.c.bf16 %v118, %v118
  %124 = vst [vmem:[%s3] sm:$0xf] %v120
  %125 = vst [vmem:[%s3 + $0x4] sm:$0xf] %v121
  %126 = vst [vmem:[%s3 + $0x8] sm:$0xf] %v122
  %127 = vst [vmem:[%s3 + $0xc] sm:$0xf] %v123
  %v128 = vadd.f32 %v111, %v113
  %v129 = vadd.f32 %v128, %v116
  %v130 = vadd.f32 %v129, %v118
  %v131 = vrot.slane %v130, 4
  %v132 = vadd.f32 %v130, %v131
  %v133 = vrot.slane %v132, 2
  %v134 = vadd.f32 %v132, %v133
  %v135 = vrot.slane %v134, 1
  %v136 = vadd.f32 %v134, %v135
  %v137 = vmul.f32 %v111, %v111
  %v138 = vmul.f32 %v113, %v113
  %v139 = vmul.f32 %v116, %v116
  %v140 = vmul.f32 %v118, %v118
  %v141 = vadd.f32 %v137, %v138
  %v142 = vadd.f32 %v141, %v139
  %v143 = vadd.f32 %v142, %v140
  %v144 = vrot.slane %v143, 4
  %v145 = vadd.f32 %v143, %v144
  %v146 = vrot.slane %v145, 2
  %v147 = vadd.f32 %v145, %v146
  %v148 = vrot.slane %v147, 1
  %v149 = vadd.f32 %v147, %v148
  %150 = vst [vmem:[%s4] sm:$0xff] %v136
  %151 = vst [vmem:[%s5] sm:$0xff] %v149
  // Predicated region
  $region14: #{_lambda_.7} parent=0 // pred_check
    _
  $region15: #{_lambda_.7} parent=0 // pred_check_branch
    %153 = sbr.rel (0) target = $region17
  $region16: #{_lambda_.7} parent=0 // pred_region
    _
  $region17: #{_lambda_.7} parent=0 // pred_fallthru
    _
  // Predicated region
  $region18: #{_lambda_.7} parent=0 // pred_check
    _
  $region19: #{_lambda_.7} parent=0 // pred_check_branch
    %155 = sbr.rel (0) target = $region21
  $region20: #{_lambda_.7} parent=0 // pred_region
    _
  $region21: #{_lambda_.7} parent=0 // pred_fallthru
    _
  // Predicated region
  $region22: #{_lambda_.7} parent=0 // pred_check
    _
  $region23: #{_lambda_.7} parent=0 // pred_check_branch
    %157 = sbr.rel (0) target = $region25
  $region24: #{_lambda_.7} parent=0 // pred_region
    _
  $region25: #{_lambda_.7} parent=0 // pred_fallthru
    _
  // Predicated region
  $region26: #{_lambda_.7} parent=0 // pred_check
    _
  $region27: #{_lambda_.7} parent=0 // pred_check_branch
    %159 = sbr.rel (0) target = $region29
  $region28: #{_lambda_.7} parent=0 // pred_region
    _
  $region29: #{_lambda_.7} parent=0 // pred_fallthru
    _
  // Predicated region
  $region30: #{_lambda_.7} parent=0 // pred_check
    _
  $region31: #{_lambda_.7} parent=0 // pred_check_branch
    %161 = sbr.rel (0) target = $region33
  $region32: #{_lambda_.7} parent=0 // pred_region
    _
  $region33: #{_lambda_.7} parent=0 // pred_fallthru
    _
  // Predicated region
  $region34: #{_lambda_.7} parent=0 // pred_check
    _
  $region35: #{_lambda_.7} parent=0 // pred_check_branch
    %163 = sbr.rel (0) target = $region37
  $region36: #{_lambda_.7} parent=0 // pred_region
    _
  $region37: #{_lambda_.7} parent=0 // pred_fallthru
    _

// kernel: _lambda_.8
$region0: #{_lambda_.8}
  #allocation0 [shape = 'u32[]', space=smem, size = 0x4, offset = 0x4, fixed_abs, tag = 'smem constant byte address 0x4 - core index']
  #allocation1 [shape = 'u32[72,128]{1,0:T(1,128)}', space=vmem, size = 0x9000, scoped, tag = 'internal scratch']
  %s0 = inlined_call_operand.vmem [shape: bf16[16,256], index: 0, kind: input, shape index: {}]
  %s1 = inlined_call_operand.vmem [shape: bf16[256,128], index: 1, kind: input, shape index: {}]
  %s2 = inlined_call_operand.vmem [shape: f32[1,128], index: 2, kind: input, shape index: {}]
  %s3 = inlined_call_operand.vmem [shape: bf16[16,128], index: 3, kind: output, shape index: {}]
  %s4 = sld [smem:[#allocation0]]
  $region22: #{_lambda_.8} parent=0
    _
  %s6 = ssub.s32 1, %s4
  %s7 = scalar_select 0, %s6, %s4
  // Predicated region
  $region2: #{_lambda_.8} parent=0 // pred_check
    _
  $region3: #{_lambda_.8} parent=0 // pred_check_branch
    %9 = sbr.rel (0) target = $region5
  $region4: #{_lambda_.8} parent=0 // pred_region
    _
  $region5: #{_lambda_.8} parent=0 // pred_fallthru
    _
  // Predicated region
  $region6: #{_lambda_.8} parent=0 // pred_check
    _
  $region7: #{_lambda_.8} parent=0 // pred_check_branch
    %11 = sbr.rel (0) target = $region9
  $region8: #{_lambda_.8} parent=0 // pred_region
    _
  $region9: #{_lambda_.8} parent=0 // pred_fallthru
    _
  // Predicated region
  $region10: #{_lambda_.8} parent=0 // pred_check
    _
  $region11: #{_lambda_.8} parent=0 // pred_check_branch
    %13 = sbr.rel (0) target = $region13
  $region12: #{_lambda_.8} parent=0 // pred_region
    _
  $region13: #{_lambda_.8} parent=0 // pred_fallthru
    _
  %v14 = vld [vmem:[%s0] sm:$0xff]
  %v15 = vld [vmem:[%s0 + $0x8] sm:$0xff]
  %v16 = vld [vmem:[%s1] sm:$0xf]
  %v17 = vld [vmem:[%s1 + $0x4] sm:$0xf]
  %v18 = vld [vmem:[%s1 + $0x8] sm:$0xf]
  %v19 = vld [vmem:[%s1 + $0xc] sm:$0xf]
  %v20 = vld [vmem:[%s1 + $0x10] sm:$0xf]
  %v21 = vld [vmem:[%s1 + $0x14] sm:$0xf]
  %v22 = vld [vmem:[%s1 + $0x18] sm:$0xf]
  %v23 = vld [vmem:[%s1 + $0x1c] sm:$0xf]
  %v24 = vld [vmem:[%s1 + $0x20] sm:$0xf]
  %v25 = vld [vmem:[%s1 + $0x24] sm:$0xf]
  %v26 = vld [vmem:[%s1 + $0x28] sm:$0xf]
  %v27 = vld [vmem:[%s1 + $0x2c] sm:$0xf]
  %v28 = vld [vmem:[%s1 + $0x30] sm:$0xf]
  %v29 = vld [vmem:[%s1 + $0x34] sm:$0xf]
  %v30 = vld [vmem:[%s1 + $0x38] sm:$0xf]
  %v31 = vld [vmem:[%s1 + $0x3c] sm:$0xf]
  %v32 = vld [vmem:[%s1 + $0x40] sm:$0xf]
  %v33 = vld [vmem:[%s1 + $0x44] sm:$0xf]
  %v34 = vld [vmem:[%s1 + $0x48] sm:$0xf]
  %v35 = vld [vmem:[%s1 + $0x4c] sm:$0xf]
  %v36 = vld [vmem:[%s1 + $0x50] sm:$0xf]
  %v37 = vld [vmem:[%s1 + $0x54] sm:$0xf]
  %v38 = vld [vmem:[%s1 + $0x58] sm:$0xf]
  %v39 = vld [vmem:[%s1 + $0x5c] sm:$0xf]
  %v40 = vld [vmem:[%s1 + $0x60] sm:$0xf]
  %v41 = vld [vmem:[%s1 + $0x64] sm:$0xf]
  %v42 = vld [vmem:[%s1 + $0x68] sm:$0xf]
  %v43 = vld [vmem:[%s1 + $0x6c] sm:$0xf]
  %v44 = vld [vmem:[%s1 + $0x70] sm:$0xf]
  %v45 = vld [vmem:[%s1 + $0x74] sm:$0xf]
  %v46 = vld [vmem:[%s1 + $0x78] sm:$0xf]
  %v47 = vld [vmem:[%s1 + $0x7c] sm:$0xf]
  %v48 = vld [vmem:[%s2] sm:$0x1]
  %v50 = vperm.slane %v48, 0
  %v54 = vunpack.c.l.b16 %v14
  %v55 = vunpack.c.h.b16 %v14
  %v56 = vunpack.c.l.b16 %v15
  %v57 = vunpack.c.h.b16 %v15
  %v58 = vpack.c.b16 %v56, %v54
  %v59 = vpack.c.b16 %v57, %v55
  %v94 = vunpack.c.l.b16 %v16
  %v95 = vunpack.c.l.b16 %v17
  %v96 = vunpack.c.l.b16 %v18
  %v97 = vunpack.c.l.b16 %v19
  %v98 = vunpack.c.l.b16 %v20
  %v99 = vunpack.c.l.b16 %v21
  %v100 = vunpack.c.l.b16 %v22
  %v101 = vunpack.c.l.b16 %v23
  %v102 = vunpack.c.l.b16 %v24
  %v103 = vunpack.c.l.b16 %v25
  %v104 = vunpack.c.l.b16 %v26
  %v105 = vunpack.c.l.b16 %v27
  %v106 = vunpack.c.l.b16 %v28
  %v107 = vunpack.c.l.b16 %v29
  %v108 = vunpack.c.l.b16 %v30
  %v109 = vunpack.c.l.b16 %v31
  %v110 = vunpack.c.l.b16 %v32
  %v111 = vunpack.c.l.b16 %v33
  %v112 = vunpack.c.l.b16 %v34
  %v113 = vunpack.c.l.b16 %v35
  %v114 = vunpack.c.l.b16 %v36
  %v115 = vunpack.c.l.b16 %v37
  %v116 = vunpack.c.l.b16 %v38
  %v117 = vunpack.c.l.b16 %v39
  %v118 = vunpack.c.l.b16 %v40
  %v119 = vunpack.c.l.b16 %v41
  %v120 = vunpack.c.l.b16 %v42
  %v121 = vunpack.c.l.b16 %v43
  %v122 = vunpack.c.l.b16 %v44
  %v123 = vunpack.c.l.b16 %v45
  %v124 = vunpack.c.l.b16 %v46
  %v125 = vunpack.c.l.b16 %v47
  %v126 = vpack.c.b16 %v95, %v94
  %v127 = vpack.c.b16 %v97, %v96
  %v128 = vpack.c.b16 %v99, %v98
  %v129 = vpack.c.b16 %v101, %v100
  %v130 = vpack.c.b16 %v103, %v102
  %v131 = vpack.c.b16 %v105, %v104
  %v132 = vpack.c.b16 %v107, %v106
  %v133 = vpack.c.b16 %v109, %v108
  %v134 = vpack.c.b16 %v111, %v110
  %v135 = vpack.c.b16 %v113, %v112
  %v136 = vpack.c.b16 %v115, %v114
  %v137 = vpack.c.b16 %v117, %v116
  %v138 = vpack.c.b16 %v119, %v118
  %v139 = vpack.c.b16 %v121, %v120
  %v140 = vpack.c.b16 %v123, %v122
  %v141 = vpack.c.b16 %v125, %v124
  %158 = vmatpush.bf16.msra.mxu0 %v133
  %159 = vmatpush.bf16.msra.mxu0 %v132
  %160 = vmatpush.bf16.msra.mxu0 %v131
  %161 = vmatpush.bf16.msra.mxu0 %v130
  %162 = vmatpush.bf16.msra.mxu0 %v129
  %163 = vmatpush.bf16.msra.mxu0 %v128
  %164 = vmatpush.bf16.msra.mxu0 %v127
  %165 = vmatpush.bf16.msra.mxu0 %v126
  %166 = vmatmul.bf16.gmra.mxu0 %v58
  %v167 = vpop.f32.mrf.mxu0
  %v168 = vadd.f32 %v50, %v167
  %v169 = vpop.f32.mrf.mxu0
  %v170 = vadd.f32 %v50, %v169
  %171 = vdwg.mxu0
  %172 = vmatpush.bf16.msra.mxu0 %v141
  %173 = vmatpush.bf16.msra.mxu0 %v140
  %174 = vmatpush.bf16.msra.mxu0 %v139
  %175 = vmatpush.bf16.msra.mxu0 %v138
  %176 = vmatpush.bf16.msra.mxu0 %v137
  %177 = vmatpush.bf16.msra.mxu0 %v136
  %178 = vmatpush.bf16.msra.mxu0 %v135
  %179 = vmatpush.bf16.msra.mxu0 %v134
  %180 = vmatmul.bf16.gmra.mxu0 %v59
  %v181 = vpop.f32.mrf.mxu0
  %v182 = vadd.f32 %v168, %v181
  %v183 = vpop.f32.mrf.mxu0
  %v184 = vadd.f32 %v170, %v183
  %185 = vdwg.mxu0
  %v186 = vpack.c.bf16 %v182, %v182
  %v187 = vpack.c.bf16 %v184, %v184
  %188 = vst [vmem:[%s3] sm:$0xf] %v186
  %189 = vst [vmem:[%s3 + $0x4] sm:$0xf] %v187
  // Predicated region
  $region14: #{_lambda_.8} parent=0 // pred_check
    _
  $region15: #{_lambda_.8} parent=0 // pred_check_branch
    %191 = sbr.rel (0) target = $region17
  $region16: #{_lambda_.8} parent=0 // pred_region
    _
  $region17: #{_lambda_.8} parent=0 // pred_fallthru
    _
  // Predicated region
  $region18: #{_lambda_.8} parent=0 // pred_check
    _
  $region19: #{_lambda_.8} parent=0 // pred_check_branch
    %193 = sbr.rel (0) target = $region21
  $region20: #{_lambda_.8} parent=0 // pred_region
    _
  $region21: #{_lambda_.8} parent=0 // pred_fallthru
    _

// kernel: _lambda_.9
$region0: #{_lambda_.9}
  #allocation0 [shape = 'u32[]', space=smem, size = 0x4, offset = 0x4, fixed_abs, tag = 'smem constant byte address 0x4 - core index']
  #allocation1 [shape = 'u32[72,128]{1,0:T(1,128)}', space=vmem, size = 0x9000, scoped, tag = 'internal scratch']
  %s0 = inlined_call_operand.vmem [shape: bf16[32,128], index: 0, kind: input, shape index: {}]
  %s1 = inlined_call_operand.vmem [shape: bf16[128,512], index: 1, kind: input, shape index: {}]
  %s2 = inlined_call_operand.vmem [shape: f32[1,512], index: 2, kind: input, shape index: {}]
  %s3 = inlined_call_operand.vmem [shape: bf16[32,512], index: 3, kind: output, shape index: {}]
  %s4 = sld [smem:[#allocation0]]
  $region22: #{_lambda_.9} parent=0
    _
  %s6 = ssub.s32 1, %s4
  %s7 = scalar_select 0, %s6, %s4
  // Predicated region
  $region2: #{_lambda_.9} parent=0 // pred_check
    _
  $region3: #{_lambda_.9} parent=0 // pred_check_branch
    %9 = sbr.rel (0) target = $region5
  $region4: #{_lambda_.9} parent=0 // pred_region
    _
  $region5: #{_lambda_.9} parent=0 // pred_fallthru
    _
  // Predicated region
  $region6: #{_lambda_.9} parent=0 // pred_check
    _
  $region7: #{_lambda_.9} parent=0 // pred_check_branch
    %11 = sbr.rel (0) target = $region9
  $region8: #{_lambda_.9} parent=0 // pred_region
    _
  $region9: #{_lambda_.9} parent=0 // pred_fallthru
    _
  // Predicated region
  $region10: #{_lambda_.9} parent=0 // pred_check
    _
  $region11: #{_lambda_.9} parent=0 // pred_check_branch
    %13 = sbr.rel (0) target = $region13
  $region12: #{_lambda_.9} parent=0 // pred_region
    _
  $region13: #{_lambda_.9} parent=0 // pred_fallthru
    _
  %v14 = vld [vmem:[%s0] sm:$0xf]
  %v15 = vld [vmem:[%s0 + $0x4] sm:$0xf]
  %v16 = vld [vmem:[%s0 + $0x8] sm:$0xf]
  %v17 = vld [vmem:[%s0 + $0xc] sm:$0xf]
  %v18 = vld [vmem:[%s1] sm:$0xff]
  %v19 = vld [vmem:[%s1 + $0x8] sm:$0xff]
  %v20 = vld [vmem:[%s1 + $0x10] sm:$0xff]
  %v21 = vld [vmem:[%s1 + $0x18] sm:$0xff]
  %v22 = vld [vmem:[%s1 + $0x20] sm:$0xff]
  %v23 = vld [vmem:[%s1 + $0x28] sm:$0xff]
  %v24 = vld [vmem:[%s1 + $0x30] sm:$0xff]
  %v25 = vld [vmem:[%s1 + $0x38] sm:$0xff]
  %v26 = vld [vmem:[%s1 + $0x40] sm:$0xff]
  %v27 = vld [vmem:[%s1 + $0x48] sm:$0xff]
  %v28 = vld [vmem:[%s1 + $0x50] sm:$0xff]
  %v29 = vld [vmem:[%s1 + $0x58] sm:$0xff]
  %v30 = vld [vmem:[%s1 + $0x60] sm:$0xff]
  %v31 = vld [vmem:[%s1 + $0x68] sm:$0xff]
  %v32 = vld [vmem:[%s1 + $0x70] sm:$0xff]
  %v33 = vld [vmem:[%s1 + $0x78] sm:$0xff]
  %v34 = vld [vmem:[%s1 + $0x80] sm:$0xff]
  %v35 = vld [vmem:[%s1 + $0x88] sm:$0xff]
  %v36 = vld [vmem:[%s1 + $0x90] sm:$0xff]
  %v37 = vld [vmem:[%s1 + $0x98] sm:$0xff]
  %v38 = vld [vmem:[%s1 + $0xa0] sm:$0xff]
  %v39 = vld [vmem:[%s1 + $0xa8] sm:$0xff]
  %v40 = vld [vmem:[%s1 + $0xb0] sm:$0xff]
  %v41 = vld [vmem:[%s1 + $0xb8] sm:$0xff]
  %v42 = vld [vmem:[%s1 + $0xc0] sm:$0xff]
  %v43 = vld [vmem:[%s1 + $0xc8] sm:$0xff]
  %v44 = vld [vmem:[%s1 + $0xd0] sm:$0xff]
  %v45 = vld [vmem:[%s1 + $0xd8] sm:$0xff]
  %v46 = vld [vmem:[%s1 + $0xe0] sm:$0xff]
  %v47 = vld [vmem:[%s1 + $0xe8] sm:$0xff]
  %v48 = vld [vmem:[%s1 + $0xf0] sm:$0xff]
  %v49 = vld [vmem:[%s1 + $0xf8] sm:$0xff]
  %v50 = vld [vmem:[%s2] sm:$0xf]
  %v52 = vperm.slane %v50, 0
  %v53 = vperm.slane %v50, 1
  %v54 = vperm.slane %v50, 2
  %v55 = vperm.slane %v50, 3
  %v64 = vunpack.c.l.b16 %v14
  %v65 = vunpack.c.l.b16 %v15
  %v66 = vunpack.c.l.b16 %v16
  %v67 = vunpack.c.l.b16 %v17
  %v68 = vpack.c.b16 %v65, %v64
  %v69 = vpack.c.b16 %v67, %v66
  %v104 = vunpack.c.l.b16 %v18
  %v105 = vunpack.c.h.b16 %v18
  %v106 = vunpack.c.l.b16 %v19
  %v107 = vunpack.c.h.b16 %v19
  %v108 = vunpack.c.l.b16 %v20
  %v109 = vunpack.c.h.b16 %v20
  %v110 = vunpack.c.l.b16 %v21
  %v111 = vunpack.c.h.b16 %v21
  %v112 = vunpack.c.l.b16 %v22
  %v113 = vunpack.c.h.b16 %v22
  %v114 = vunpack.c.l.b16 %v23
  %v115 = vunpack.c.h.b16 %v23
  %v116 = vunpack.c.l.b16 %v24
  %v117 = vunpack.c.h.b16 %v24
  %v118 = vunpack.c.l.b16 %v25
  %v119 = vunpack.c.h.b16 %v25
  %v120 = vunpack.c.l.b16 %v26
  %v121 = vunpack.c.h.b16 %v26
  %v122 = vunpack.c.l.b16 %v27
  %v123 = vunpack.c.h.b16 %v27
  %v124 = vunpack.c.l.b16 %v28
  %v125 = vunpack.c.h.b16 %v28
  %v126 = vunpack.c.l.b16 %v29
  %v127 = vunpack.c.h.b16 %v29
  %v128 = vunpack.c.l.b16 %v30
  %v129 = vunpack.c.h.b16 %v30
  %v130 = vunpack.c.l.b16 %v31
  %v131 = vunpack.c.h.b16 %v31
  %v132 = vunpack.c.l.b16 %v32
  %v133 = vunpack.c.h.b16 %v32
  %v134 = vunpack.c.l.b16 %v33
  %v135 = vunpack.c.h.b16 %v33
  %v136 = vunpack.c.l.b16 %v34
  %v137 = vunpack.c.h.b16 %v34
  %v138 = vunpack.c.l.b16 %v35
  %v139 = vunpack.c.h.b16 %v35
  %v140 = vunpack.c.l.b16 %v36
  %v141 = vunpack.c.h.b16 %v36
  %v142 = vunpack.c.l.b16 %v37
  %v143 = vunpack.c.h.b16 %v37
  %v144 = vunpack.c.l.b16 %v38
  %v145 = vunpack.c.h.b16 %v38
  %v146 = vunpack.c.l.b16 %v39
  %v147 = vunpack.c.h.b16 %v39
  %v148 = vunpack.c.l.b16 %v40
  %v149 = vunpack.c.h.b16 %v40
  %v150 = vunpack.c.l.b16 %v41
  %v151 = vunpack.c.h.b16 %v41
  %v152 = vunpack.c.l.b16 %v42
  %v153 = vunpack.c.h.b16 %v42
  %v154 = vunpack.c.l.b16 %v43
  %v155 = vunpack.c.h.b16 %v43
  %v156 = vunpack.c.l.b16 %v44
  %v157 = vunpack.c.h.b16 %v44
  %v158 = vunpack.c.l.b16 %v45
  %v159 = vunpack.c.h.b16 %v45
  %v160 = vunpack.c.l.b16 %v46
  %v161 = vunpack.c.h.b16 %v46
  %v162 = vunpack.c.l.b16 %v47
  %v163 = vunpack.c.h.b16 %v47
  %v164 = vunpack.c.l.b16 %v48
  %v165 = vunpack.c.h.b16 %v48
  %v166 = vunpack.c.l.b16 %v49
  %v167 = vunpack.c.h.b16 %v49
  %v168 = vpack.c.b16 %v108, %v104
  %v169 = vpack.c.b16 %v109, %v105
  %v170 = vpack.c.b16 %v110, %v106
  %v171 = vpack.c.b16 %v111, %v107
  %v172 = vpack.c.b16 %v116, %v112
  %v173 = vpack.c.b16 %v117, %v113
  %v174 = vpack.c.b16 %v118, %v114
  %v175 = vpack.c.b16 %v119, %v115
  %v176 = vpack.c.b16 %v124, %v120
  %v177 = vpack.c.b16 %v125, %v121
  %v178 = vpack.c.b16 %v126, %v122
  %v179 = vpack.c.b16 %v127, %v123
  %v180 = vpack.c.b16 %v132, %v128
  %v181 = vpack.c.b16 %v133, %v129
  %v182 = vpack.c.b16 %v134, %v130
  %v183 = vpack.c.b16 %v135, %v131
  %v184 = vpack.c.b16 %v140, %v136
  %v185 = vpack.c.b16 %v141, %v137
  %v186 = vpack.c.b16 %v142, %v138
  %v187 = vpack.c.b16 %v143, %v139
  %v188 = vpack.c.b16 %v148, %v144
  %v189 = vpack.c.b16 %v149, %v145
  %v190 = vpack.c.b16 %v150, %v146
  %v191 = vpack.c.b16 %v151, %v147
  %v192 = vpack.c.b16 %v156, %v152
  %v193 = vpack.c.b16 %v157, %v153
  %v194 = vpack.c.b16 %v158, %v154
  %v195 = vpack.c.b16 %v159, %v155
  %v196 = vpack.c.b16 %v164, %v160
  %v197 = vpack.c.b16 %v165, %v161
  %v198 = vpack.c.b16 %v166, %v162
  %v199 = vpack.c.b16 %v167, %v163
  %232 = vmatpush.bf16.msra.mxu0 %v196
  %233 = vmatpush.bf16.msra.mxu0 %v192
  %234 = vmatpush.bf16.msra.mxu0 %v188
  %235 = vmatpush.bf16.msra.mxu0 %v184
  %236 = vmatpush.bf16.msra.mxu0 %v180
  %237 = vmatpush.bf16.msra.mxu0 %v176
  %238 = vmatpush.bf16.msra.mxu0 %v172
  %239 = vmatpush.bf16.msra.mxu0 %v168
  %240 = vmatmul.bf16.gmra.mxu0 %v68
  %v241 = vpop.f32.mrf.mxu0
  %v242 = vadd.f32 %v52, %v241
  %v243 = vpop.f32.mrf.mxu0
  %v244 = vadd.f32 %v52, %v243
  %245 = vmatmul.bf16.gmra.mxu0 %v69
  %v246 = vpop.f32.mrf.mxu0
  %v247 = vadd.f32 %v52, %v246
  %v248 = vpop.f32.mrf.mxu0
  %v249 = vadd.f32 %v52, %v248
  %250 = vdwg.mxu0
  %251 = vmatpush.bf16.msra.mxu0 %v197
  %252 = vmatpush.bf16.msra.mxu0 %v193
  %253 = vmatpush.bf16.msra.mxu0 %v189
  %254 = vmatpush.bf16.msra.mxu0 %v185
  %255 = vmatpush.bf16.msra.mxu0 %v181
  %256 = vmatpush.bf16.msra.mxu0 %v177
  %257 = vmatpush.bf16.msra.mxu0 %v173
  %258 = vmatpush.bf16.msra.mxu0 %v169
  %259 = vmatmul.bf16.gmra.mxu0 %v68
  %v260 = vpop.f32.mrf.mxu0
  %v261 = vadd.f32 %v53, %v260
  %v262 = vpop.f32.mrf.mxu0
  %v263 = vadd.f32 %v53, %v262
  %264 = vmatmul.bf16.gmra.mxu0 %v69
  %v265 = vpop.f32.mrf.mxu0
  %v266 = vadd.f32 %v53, %v265
  %v267 = vpop.f32.mrf.mxu0
  %v268 = vadd.f32 %v53, %v267
  %269 = vdwg.mxu0
  %270 = vmatpush.bf16.msra.mxu0 %v198
  %271 = vmatpush.bf16.msra.mxu0 %v194
  %272 = vmatpush.bf16.msra.mxu0 %v190
  %273 = vmatpush.bf16.msra.mxu0 %v186
  %274 = vmatpush.bf16.msra.mxu0 %v182
  %275 = vmatpush.bf16.msra.mxu0 %v178
  %276 = vmatpush.bf16.msra.mxu0 %v174
  %277 = vmatpush.bf16.msra.mxu0 %v170
  %278 = vmatmul.bf16.gmra.mxu0 %v68
  %v279 = vpop.f32.mrf.mxu0
  %v280 = vadd.f32 %v54, %v279
  %v281 = vpop.f32.mrf.mxu0
  %v282 = vadd.f32 %v54, %v281
  %283 = vmatmul.bf16.gmra.mxu0 %v69
  %v284 = vpop.f32.mrf.mxu0
  %v285 = vadd.f32 %v54, %v284
  %v286 = vpop.f32.mrf.mxu0
  %v287 = vadd.f32 %v54, %v286
  %288 = vdwg.mxu0
  %289 = vmatpush.bf16.msra.mxu0 %v199
  %290 = vmatpush.bf16.msra.mxu0 %v195
  %291 = vmatpush.bf16.msra.mxu0 %v191
  %292 = vmatpush.bf16.msra.mxu0 %v187
  %293 = vmatpush.bf16.msra.mxu0 %v183
  %294 = vmatpush.bf16.msra.mxu0 %v179
  %295 = vmatpush.bf16.msra.mxu0 %v175
  %296 = vmatpush.bf16.msra.mxu0 %v171
  %297 = vmatmul.bf16.gmra.mxu0 %v68
  %v298 = vpop.f32.mrf.mxu0
  %v299 = vadd.f32 %v55, %v298
  %v300 = vpop.f32.mrf.mxu0
  %v301 = vadd.f32 %v55, %v300
  %302 = vmatmul.bf16.gmra.mxu0 %v69
  %v303 = vpop.f32.mrf.mxu0
  %v304 = vadd.f32 %v55, %v303
  %v305 = vpop.f32.mrf.mxu0
  %v306 = vadd.f32 %v55, %v305
  %307 = vdwg.mxu0
  %v308 = vpack.c.bf16 %v261, %v242
  %v309 = vpack.c.bf16 %v299, %v280
  %v310 = vpack.c.bf16 %v263, %v244
  %v311 = vpack.c.bf16 %v301, %v282
  %v312 = vpack.c.bf16 %v266, %v247
  %v313 = vpack.c.bf16 %v304, %v285
  %v314 = vpack.c.bf16 %v268, %v249
  %v315 = vpack.c.bf16 %v306, %v287
  %316 = vst [vmem:[%s3] sm:$0xff] %v308
  %317 = vst [vmem:[%s3 + $0x8] sm:$0xff] %v309
  %318 = vst [vmem:[%s3 + $0x10] sm:$0xff] %v310
  %319 = vst [vmem:[%s3 + $0x18] sm:$0xff] %v311
  %320 = vst [vmem:[%s3 + $0x20] sm:$0xff] %v312
  %321 = vst [vmem:[%s3 + $0x28] sm:$0xff] %v313
  %322 = vst [vmem:[%s3 + $0x30] sm:$0xff] %v314
  %323 = vst [vmem:[%s3 + $0x38] sm:$0xff] %v315
  // Predicated region
  $region14: #{_lambda_.9} parent=0 // pred_check
    _
  $region15: #{_lambda_.9} parent=0 // pred_check_branch
    %325 = sbr.rel (0) target = $region17
  $region16: #{_lambda_.9} parent=0 // pred_region
    _
  $region17: #{_lambda_.9} parent=0 // pred_fallthru
    _
  // Predicated region
  $region18: #{_lambda_.9} parent=0 // pred_check
    _
  $region19: #{_lambda_.9} parent=0 // pred_check_branch
    %327 = sbr.rel (0) target = $region21
  $region20: #{_lambda_.9} parent=0 // pred_region
    _
  $region21: #{_lambda_.9} parent=0 // pred_fallthru
    _

// kernel: _lambda_.10
$region0: #{_lambda_.10}
  #allocation0 [shape = 'u32[]', space=smem, size = 0x4, offset = 0x4, fixed_abs, tag = 'smem constant byte address 0x4 - core index']
  #allocation1 [shape = 'u32[72,128]{1,0:T(1,128)}', space=vmem, size = 0x9000, scoped, tag = 'internal scratch']
  %s0 = inlined_call_operand.vmem [shape: bf16[64,128], index: 0, kind: input, shape index: {}]
  %s1 = inlined_call_operand.vmem [shape: bf16[128,512], index: 1, kind: input, shape index: {}]
  %s2 = inlined_call_operand.vmem [shape: f32[1,512], index: 2, kind: input, shape index: {}]
  %s3 = inlined_call_operand.vmem [shape: bf16[64,512], index: 3, kind: output, shape index: {}]
  %s4 = sld [smem:[#allocation0]]
  $region22: #{_lambda_.10} parent=0
    _
  %s6 = ssub.s32 1, %s4
  %s7 = scalar_select 0, %s6, %s4
  // Predicated region
  $region2: #{_lambda_.10} parent=0 // pred_check
    _
  $region3: #{_lambda_.10} parent=0 // pred_check_branch
    %9 = sbr.rel (0) target = $region5
  $region4: #{_lambda_.10} parent=0 // pred_region
    _
  $region5: #{_lambda_.10} parent=0 // pred_fallthru
    _
  // Predicated region
  $region6: #{_lambda_.10} parent=0 // pred_check
    _
  $region7: #{_lambda_.10} parent=0 // pred_check_branch
    %11 = sbr.rel (0) target = $region9
  $region8: #{_lambda_.10} parent=0 // pred_region
    _
  $region9: #{_lambda_.10} parent=0 // pred_fallthru
    _
  // Predicated region
  $region10: #{_lambda_.10} parent=0 // pred_check
    _
  $region11: #{_lambda_.10} parent=0 // pred_check_branch
    %13 = sbr.rel (0) target = $region13
  $region12: #{_lambda_.10} parent=0 // pred_region
    _
  $region13: #{_lambda_.10} parent=0 // pred_fallthru
    _
  %v14 = vld [vmem:[%s0] sm:$0xf]
  %v15 = vld [vmem:[%s0 + $0x4] sm:$0xf]
  %v16 = vld [vmem:[%s0 + $0x8] sm:$0xf]
  %v17 = vld [vmem:[%s0 + $0xc] sm:$0xf]
  %v18 = vld [vmem:[%s0 + $0x10] sm:$0xf]
  %v19 = vld [vmem:[%s0 + $0x14] sm:$0xf]
  %v20 = vld [vmem:[%s0 + $0x18] sm:$0xf]
  %v21 = vld [vmem:[%s0 + $0x1c] sm:$0xf]
  %v22 = vld [vmem:[%s1] sm:$0xff]
  %v23 = vld [vmem:[%s1 + $0x8] sm:$0xff]
  %v24 = vld [vmem:[%s1 + $0x10] sm:$0xff]
  %v25 = vld [vmem:[%s1 + $0x18] sm:$0xff]
  %v26 = vld [vmem:[%s1 + $0x20] sm:$0xff]
  %v27 = vld [vmem:[%s1 + $0x28] sm:$0xff]
  %v28 = vld [vmem:[%s1 + $0x30] sm:$0xff]
  %v29 = vld [vmem:[%s1 + $0x38] sm:$0xff]
  %v30 = vld [vmem:[%s1 + $0x40] sm:$0xff]
  %v31 = vld [vmem:[%s1 + $0x48] sm:$0xff]
  %v32 = vld [vmem:[%s1 + $0x50] sm:$0xff]
  %v33 = vld [vmem:[%s1 + $0x58] sm:$0xff]
  %v34 = vld [vmem:[%s1 + $0x60] sm:$0xff]
  %v35 = vld [vmem:[%s1 + $0x68] sm:$0xff]
  %v36 = vld [vmem:[%s1 + $0x70] sm:$0xff]
  %v37 = vld [vmem:[%s1 + $0x78] sm:$0xff]
  %v38 = vld [vmem:[%s1 + $0x80] sm:$0xff]
  %v39 = vld [vmem:[%s1 + $0x88] sm:$0xff]
  %v40 = vld [vmem:[%s1 + $0x90] sm:$0xff]
  %v41 = vld [vmem:[%s1 + $0x98] sm:$0xff]
  %v42 = vld [vmem:[%s1 + $0xa0] sm:$0xff]
  %v43 = vld [vmem:[%s1 + $0xa8] sm:$0xff]
  %v44 = vld [vmem:[%s1 + $0xb0] sm:$0xff]
  %v45 = vld [vmem:[%s1 + $0xb8] sm:$0xff]
  %v46 = vld [vmem:[%s1 + $0xc0] sm:$0xff]
  %v47 = vld [vmem:[%s1 + $0xc8] sm:$0xff]
  %v48 = vld [vmem:[%s1 + $0xd0] sm:$0xff]
  %v49 = vld [vmem:[%s1 + $0xd8] sm:$0xff]
  %v50 = vld [vmem:[%s1 + $0xe0] sm:$0xff]
  %v51 = vld [vmem:[%s1 + $0xe8] sm:$0xff]
  %v52 = vld [vmem:[%s1 + $0xf0] sm:$0xff]
  %v53 = vld [vmem:[%s1 + $0xf8] sm:$0xff]
  %v54 = vld [vmem:[%s2] sm:$0xf]
  %v56 = vperm.slane %v54, 0
  %v57 = vperm.slane %v54, 1
  %v58 = vperm.slane %v54, 2
  %v59 = vperm.slane %v54, 3
  %v72 = vunpack.c.l.b16 %v14
  %v73 = vunpack.c.l.b16 %v15
  %v74 = vunpack.c.l.b16 %v16
  %v75 = vunpack.c.l.b16 %v17
  %v76 = vunpack.c.l.b16 %v18
  %v77 = vunpack.c.l.b16 %v19
  %v78 = vunpack.c.l.b16 %v20
  %v79 = vunpack.c.l.b16 %v21
  %v80 = vpack.c.b16 %v73, %v72
  %v81 = vpack.c.b16 %v75, %v74
  %v82 = vpack.c.b16 %v77, %v76
  %v83 = vpack.c.b16 %v79, %v78
  %v120 = vunpack.c.l.b16 %v22
  %v121 = vunpack.c.h.b16 %v22
  %v122 = vunpack.c.l.b16 %v23
  %v123 = vunpack.c.h.b16 %v23
  %v124 = vunpack.c.l.b16 %v24
  %v125 = vunpack.c.h.b16 %v24
  %v126 = vunpack.c.l.b16 %v25
  %v127 = vunpack.c.h.b16 %v25
  %v128 = vunpack.c.l.b16 %v26
  %v129 = vunpack.c.h.b16 %v26
  %v130 = vunpack.c.l.b16 %v27
  %v131 = vunpack.c.h.b16 %v27
  %v132 = vunpack.c.l.b16 %v28
  %v133 = vunpack.c.h.b16 %v28
  %v134 = vunpack.c.l.b16 %v29
  %v135 = vunpack.c.h.b16 %v29
  %v136 = vunpack.c.l.b16 %v30
  %v137 = vunpack.c.h.b16 %v30
  %v138 = vunpack.c.l.b16 %v31
  %v139 = vunpack.c.h.b16 %v31
  %v140 = vunpack.c.l.b16 %v32
  %v141 = vunpack.c.h.b16 %v32
  %v142 = vunpack.c.l.b16 %v33
  %v143 = vunpack.c.h.b16 %v33
  %v144 = vunpack.c.l.b16 %v34
  %v145 = vunpack.c.h.b16 %v34
  %v146 = vunpack.c.l.b16 %v35
  %v147 = vunpack.c.h.b16 %v35
  %v148 = vunpack.c.l.b16 %v36
  %v149 = vunpack.c.h.b16 %v36
  %v150 = vunpack.c.l.b16 %v37
  %v151 = vunpack.c.h.b16 %v37
  %v152 = vunpack.c.l.b16 %v38
  %v153 = vunpack.c.h.b16 %v38
  %v154 = vunpack.c.l.b16 %v39
  %v155 = vunpack.c.h.b16 %v39
  %v156 = vunpack.c.l.b16 %v40
  %v157 = vunpack.c.h.b16 %v40
  %v158 = vunpack.c.l.b16 %v41
  %v159 = vunpack.c.h.b16 %v41
  %v160 = vunpack.c.l.b16 %v42
  %v161 = vunpack.c.h.b16 %v42
  %v162 = vunpack.c.l.b16 %v43
  %v163 = vunpack.c.h.b16 %v43
  %v164 = vunpack.c.l.b16 %v44
  %v165 = vunpack.c.h.b16 %v44
  %v166 = vunpack.c.l.b16 %v45
  %v167 = vunpack.c.h.b16 %v45
  %v168 = vunpack.c.l.b16 %v46
  %v169 = vunpack.c.h.b16 %v46
  %v170 = vunpack.c.l.b16 %v47
  %v171 = vunpack.c.h.b16 %v47
  %v172 = vunpack.c.l.b16 %v48
  %v173 = vunpack.c.h.b16 %v48
  %v174 = vunpack.c.l.b16 %v49
  %v175 = vunpack.c.h.b16 %v49
  %v176 = vunpack.c.l.b16 %v50
  %v177 = vunpack.c.h.b16 %v50
  %v178 = vunpack.c.l.b16 %v51
  %v179 = vunpack.c.h.b16 %v51
  %v180 = vunpack.c.l.b16 %v52
  %v181 = vunpack.c.h.b16 %v52
  %v182 = vunpack.c.l.b16 %v53
  %v183 = vunpack.c.h.b16 %v53
  %v184 = vpack.c.b16 %v124, %v120
  %v185 = vpack.c.b16 %v125, %v121
  %v186 = vpack.c.b16 %v126, %v122
  %v187 = vpack.c.b16 %v127, %v123
  %v188 = vpack.c.b16 %v132, %v128
  %v189 = vpack.c.b16 %v133, %v129
  %v190 = vpack.c.b16 %v134, %v130
  %v191 = vpack.c.b16 %v135, %v131
  %v192 = vpack.c.b16 %v140, %v136
  %v193 = vpack.c.b16 %v141, %v137
  %v194 = vpack.c.b16 %v142, %v138
  %v195 = vpack.c.b16 %v143, %v139
  %v196 = vpack.c.b16 %v148, %v144
  %v197 = vpack.c.b16 %v149, %v145
  %v198 = vpack.c.b16 %v150, %v146
  %v199 = vpack.c.b16 %v151, %v147
  %v200 = vpack.c.b16 %v156, %v152
  %v201 = vpack.c.b16 %v157, %v153
  %v202 = vpack.c.b16 %v158, %v154
  %v203 = vpack.c.b16 %v159, %v155
  %v204 = vpack.c.b16 %v164, %v160
  %v205 = vpack.c.b16 %v165, %v161
  %v206 = vpack.c.b16 %v166, %v162
  %v207 = vpack.c.b16 %v167, %v163
  %v208 = vpack.c.b16 %v172, %v168
  %v209 = vpack.c.b16 %v173, %v169
  %v210 = vpack.c.b16 %v174, %v170
  %v211 = vpack.c.b16 %v175, %v171
  %v212 = vpack.c.b16 %v180, %v176
  %v213 = vpack.c.b16 %v181, %v177
  %v214 = vpack.c.b16 %v182, %v178
  %v215 = vpack.c.b16 %v183, %v179
  %248 = vmatpush.bf16.msra.mxu0 %v212
  %249 = vmatpush.bf16.msra.mxu0 %v208
  %250 = vmatpush.bf16.msra.mxu0 %v204
  %251 = vmatpush.bf16.msra.mxu0 %v200
  %252 = vmatpush.bf16.msra.mxu0 %v196
  %253 = vmatpush.bf16.msra.mxu0 %v192
  %254 = vmatpush.bf16.msra.mxu0 %v188
  %255 = vmatpush.bf16.msra.mxu0 %v184
  %256 = vmatmul.bf16.gmra.mxu0 %v80
  %v257 = vpop.f32.mrf.mxu0
  %v258 = vadd.f32 %v56, %v257
  %v259 = vpop.f32.mrf.mxu0
  %v260 = vadd.f32 %v56, %v259
  %261 = vmatmul.bf16.gmra.mxu0 %v81
  %v262 = vpop.f32.mrf.mxu0
  %v263 = vadd.f32 %v56, %v262
  %v264 = vpop.f32.mrf.mxu0
  %v265 = vadd.f32 %v56, %v264
  %266 = vmatmul.bf16.gmra.mxu0 %v82
  %v267 = vpop.f32.mrf.mxu0
  %v268 = vadd.f32 %v56, %v267
  %v269 = vpop.f32.mrf.mxu0
  %v270 = vadd.f32 %v56, %v269
  %271 = vmatmul.bf16.gmra.mxu0 %v83
  %v272 = vpop.f32.mrf.mxu0
  %v273 = vadd.f32 %v56, %v272
  %v274 = vpop.f32.mrf.mxu0
  %v275 = vadd.f32 %v56, %v274
  %276 = vdwg.mxu0
  %277 = vmatpush.bf16.msra.mxu0 %v213
  %278 = vmatpush.bf16.msra.mxu0 %v209
  %279 = vmatpush.bf16.msra.mxu0 %v205
  %280 = vmatpush.bf16.msra.mxu0 %v201
  %281 = vmatpush.bf16.msra.mxu0 %v197
  %282 = vmatpush.bf16.msra.mxu0 %v193
  %283 = vmatpush.bf16.msra.mxu0 %v189
  %284 = vmatpush.bf16.msra.mxu0 %v185
  %285 = vmatmul.bf16.gmra.mxu0 %v80
  %v286 = vpop.f32.mrf.mxu0
  %v287 = vadd.f32 %v57, %v286
  %v288 = vpop.f32.mrf.mxu0
  %v289 = vadd.f32 %v57, %v288
  %290 = vmatmul.bf16.gmra.mxu0 %v81
  %v291 = vpop.f32.mrf.mxu0
  %v292 = vadd.f32 %v57, %v291
  %v293 = vpop.f32.mrf.mxu0
  %v294 = vadd.f32 %v57, %v293
  %295 = vmatmul.bf16.gmra.mxu0 %v82
  %v296 = vpop.f32.mrf.mxu0
  %v297 = vadd.f32 %v57, %v296
  %v298 = vpop.f32.mrf.mxu0
  %v299 = vadd.f32 %v57, %v298
  %300 = vmatmul.bf16.gmra.mxu0 %v83
  %v301 = vpop.f32.mrf.mxu0
  %v302 = vadd.f32 %v57, %v301
  %v303 = vpop.f32.mrf.mxu0
  %v304 = vadd.f32 %v57, %v303
  %305 = vdwg.mxu0
  %306 = vmatpush.bf16.msra.mxu0 %v214
  %307 = vmatpush.bf16.msra.mxu0 %v210
  %308 = vmatpush.bf16.msra.mxu0 %v206
  %309 = vmatpush.bf16.msra.mxu0 %v202
  %310 = vmatpush.bf16.msra.mxu0 %v198
  %311 = vmatpush.bf16.msra.mxu0 %v194
  %312 = vmatpush.bf16.msra.mxu0 %v190
  %313 = vmatpush.bf16.msra.mxu0 %v186
  %314 = vmatmul.bf16.gmra.mxu0 %v80
  %v315 = vpop.f32.mrf.mxu0
  %v316 = vadd.f32 %v58, %v315
  %v317 = vpop.f32.mrf.mxu0
  %v318 = vadd.f32 %v58, %v317
  %319 = vmatmul.bf16.gmra.mxu0 %v81
  %v320 = vpop.f32.mrf.mxu0
  %v321 = vadd.f32 %v58, %v320
  %v322 = vpop.f32.mrf.mxu0
  %v323 = vadd.f32 %v58, %v322
  %324 = vmatmul.bf16.gmra.mxu0 %v82
  %v325 = vpop.f32.mrf.mxu0
  %v326 = vadd.f32 %v58, %v325
  %v327 = vpop.f32.mrf.mxu0
  %v328 = vadd.f32 %v58, %v327
  %329 = vmatmul.bf16.gmra.mxu0 %v83
  %v330 = vpop.f32.mrf.mxu0
  %v331 = vadd.f32 %v58, %v330
  %v332 = vpop.f32.mrf.mxu0
  %v333 = vadd.f32 %v58, %v332
  %334 = vdwg.mxu0
  %335 = vmatpush.bf16.msra.mxu0 %v215
  %336 = vmatpush.bf16.msra.mxu0 %v211
  %337 = vmatpush.bf16.msra.mxu0 %v207
  %338 = vmatpush.bf16.msra.mxu0 %v203
  %339 = vmatpush.bf16.msra.mxu0 %v199
  %340 = vmatpush.bf16.msra.mxu0 %v195
  %341 = vmatpush.bf16.msra.mxu0 %v191
  %342 = vmatpush.bf16.msra.mxu0 %v187
  %343 = vmatmul.bf16.gmra.mxu0 %v80
  %v344 = vpop.f32.mrf.mxu0
  %v345 = vadd.f32 %v59, %v344
  %v346 = vpop.f32.mrf.mxu0
  %v347 = vadd.f32 %v59, %v346
  %348 = vmatmul.bf16.gmra.mxu0 %v81
  %v349 = vpop.f32.mrf.mxu0
  %v350 = vadd.f32 %v59, %v349
  %v351 = vpop.f32.mrf.mxu0
  %v352 = vadd.f32 %v59, %v351
  %353 = vmatmul.bf16.gmra.mxu0 %v82
  %v354 = vpop.f32.mrf.mxu0
  %v355 = vadd.f32 %v59, %v354
  %v356 = vpop.f32.mrf.mxu0
  %v357 = vadd.f32 %v59, %v356
  %358 = vmatmul.bf16.gmra.mxu0 %v83
  %v359 = vpop.f32.mrf.mxu0
  %v360 = vadd.f32 %v59, %v359
  %v361 = vpop.f32.mrf.mxu0
  %v362 = vadd.f32 %v59, %v361
  %363 = vdwg.mxu0
  %v364 = vpack.c.bf16 %v287, %v258
  %v365 = vpack.c.bf16 %v345, %v316
  %v366 = vpack.c.bf16 %v289, %v260
  %v367 = vpack.c.bf16 %v347, %v318
  %v368 = vpack.c.bf16 %v292, %v263
  %v369 = vpack.c.bf16 %v350, %v321
  %v370 = vpack.c.bf16 %v294, %v265
  %v371 = vpack.c.bf16 %v352, %v323
  %v372 = vpack.c.bf16 %v297, %v268
  %v373 = vpack.c.bf16 %v355, %v326
  %v374 = vpack.c.bf16 %v299, %v270
  %v375 = vpack.c.bf16 %v357, %v328
  %v376 = vpack.c.bf16 %v302, %v273
  %v377 = vpack.c.bf16 %v360, %v331
  %v378 = vpack.c.bf16 %v304, %v275
  %v379 = vpack.c.bf16 %v362, %v333
  %380 = vst [vmem:[%s3] sm:$0xff] %v364
  %381 = vst [vmem:[%s3 + $0x8] sm:$0xff] %v365
  %382 = vst [vmem:[%s3 + $0x10] sm:$0xff] %v366
  %383 = vst [vmem:[%s3 + $0x18] sm:$0xff] %v367
  %384 = vst [vmem:[%s3 + $0x20] sm:$0xff] %v368
  %385 = vst [vmem:[%s3 + $0x28] sm:$0xff] %v369
  %386 = vst [vmem:[%s3 + $0x30] sm:$0xff] %v370
  %387 = vst [vmem:[%s3 + $0x38] sm:$0xff] %v371
  %388 = vst [vmem:[%s3 + $0x40] sm:$0xff] %v372
  %389 = vst [vmem:[%s3 + $0x48] sm:$0xff] %v373
  %390 = vst [vmem:[%s3 + $0x50] sm:$0xff] %v374
  %391 = vst [vmem:[%s3 + $0x58] sm:$0xff] %v375
  %392 = vst [vmem:[%s3 + $0x60] sm:$0xff] %v376
  %393 = vst [vmem:[%s3 + $0x68] sm:$0xff] %v377
  %394 = vst [vmem:[%s3 + $0x70] sm:$0xff] %v378
  %395 = vst [vmem:[%s3 + $0x78] sm:$0xff] %v379
  // Predicated region
  $region14: #{_lambda_.10} parent=0 // pred_check
    _
  $region15: #{_lambda_.10} parent=0 // pred_check_branch
    %397 = sbr.rel (0) target = $region17
  $region16: #{_lambda_.10} parent=0 // pred_region
    _
  $region17: #{_lambda_.10} parent=0 // pred_fallthru
    _
  // Predicated region
  $region18: #{_lambda_.10} parent=0 // pred_check
    _
  $region19: #{_lambda_.10} parent=0 // pred_check_branch
    %399 = sbr.rel (0) target = $region21
  $region20: #{_lambda_.10} parent=0 // pred_region
    _
  $region21: #{_lambda_.10} parent=0 // pred_fallthru
    _

// kernel: _lambda_.11
$region0: #{_lambda_.11}
  #allocation0 [shape = 'u32[]', space=smem, size = 0x4, offset = 0x4, fixed_abs, tag = 'smem constant byte address 0x4 - core index']
  #allocation1 [shape = 'u32[72,128]{1,0:T(1,128)}', space=vmem, size = 0x9000, scoped, tag = 'internal scratch']
  %s0 = inlined_call_operand.vmem [shape: bf16[176,128], index: 0, kind: input, shape index: {}]
  %s1 = inlined_call_operand.vmem [shape: bf16[128,512], index: 1, kind: input, shape index: {}]
  %s2 = inlined_call_operand.vmem [shape: f32[1,512], index: 2, kind: input, shape index: {}]
  %s3 = inlined_call_operand.vmem [shape: f32[176,512], index: 3, kind: output, shape index: {}]
  %s4 = sld [smem:[#allocation0]]
  $region22: #{_lambda_.11} parent=0
    _
  %s6 = ssub.s32 1, %s4
  %s7 = scalar_select 0, %s6, %s4
  // Predicated region
  $region2: #{_lambda_.11} parent=0 // pred_check
    _
  $region3: #{_lambda_.11} parent=0 // pred_check_branch
    %9 = sbr.rel (0) target = $region5
  $region4: #{_lambda_.11} parent=0 // pred_region
    _
  $region5: #{_lambda_.11} parent=0 // pred_fallthru
    _
  // Predicated region
  $region6: #{_lambda_.11} parent=0 // pred_check
    _
  $region7: #{_lambda_.11} parent=0 // pred_check_branch
    %11 = sbr.rel (0) target = $region9
  $region8: #{_lambda_.11} parent=0 // pred_region
    _
  $region9: #{_lambda_.11} parent=0 // pred_fallthru
    _
  // Predicated region
  $region10: #{_lambda_.11} parent=0 // pred_check
    _
  $region11: #{_lambda_.11} parent=0 // pred_check_branch
    %13 = sbr.rel (0) target = $region13
  $region12: #{_lambda_.11} parent=0 // pred_region
    _
  $region13: #{_lambda_.11} parent=0 // pred_fallthru
    _
  %v14 = vld [vmem:[%s0] sm:$0xf]
  %v15 = vld [vmem:[%s0 + $0x4] sm:$0xf]
  %v16 = vld [vmem:[%s0 + $0x8] sm:$0xf]
  %v17 = vld [vmem:[%s0 + $0xc] sm:$0xf]
  %v18 = vld [vmem:[%s0 + $0x10] sm:$0xf]
  %v19 = vld [vmem:[%s0 + $0x14] sm:$0xf]
  %v20 = vld [vmem:[%s0 + $0x18] sm:$0xf]
  %v21 = vld [vmem:[%s0 + $0x1c] sm:$0xf]
  %v22 = vld [vmem:[%s0 + $0x20] sm:$0xf]
  %v23 = vld [vmem:[%s0 + $0x24] sm:$0xf]
  %v24 = vld [vmem:[%s0 + $0x28] sm:$0xf]
  %v25 = vld [vmem:[%s0 + $0x2c] sm:$0xf]
  %v26 = vld [vmem:[%s0 + $0x30] sm:$0xf]
  %v27 = vld [vmem:[%s0 + $0x34] sm:$0xf]
  %v28 = vld [vmem:[%s0 + $0x38] sm:$0xf]
  %v29 = vld [vmem:[%s0 + $0x3c] sm:$0xf]
  %v30 = vld [vmem:[%s0 + $0x40] sm:$0xf]
  %v31 = vld [vmem:[%s0 + $0x44] sm:$0xf]
  %v32 = vld [vmem:[%s0 + $0x48] sm:$0xf]
  %v33 = vld [vmem:[%s0 + $0x4c] sm:$0xf]
  %v34 = vld [vmem:[%s0 + $0x50] sm:$0xf]
  %v35 = vld [vmem:[%s0 + $0x54] sm:$0xf]
  %v36 = vld [vmem:[%s1] sm:$0xff]
  %v37 = vld [vmem:[%s1 + $0x8] sm:$0xff]
  %v38 = vld [vmem:[%s1 + $0x10] sm:$0xff]
  %v39 = vld [vmem:[%s1 + $0x18] sm:$0xff]
  %v40 = vld [vmem:[%s1 + $0x20] sm:$0xff]
  %v41 = vld [vmem:[%s1 + $0x28] sm:$0xff]
  %v42 = vld [vmem:[%s1 + $0x30] sm:$0xff]
  %v43 = vld [vmem:[%s1 + $0x38] sm:$0xff]
  %v44 = vld [vmem:[%s1 + $0x40] sm:$0xff]
  %v45 = vld [vmem:[%s1 + $0x48] sm:$0xff]
  %v46 = vld [vmem:[%s1 + $0x50] sm:$0xff]
  %v47 = vld [vmem:[%s1 + $0x58] sm:$0xff]
  %v48 = vld [vmem:[%s1 + $0x60] sm:$0xff]
  %v49 = vld [vmem:[%s1 + $0x68] sm:$0xff]
  %v50 = vld [vmem:[%s1 + $0x70] sm:$0xff]
  %v51 = vld [vmem:[%s1 + $0x78] sm:$0xff]
  %v52 = vld [vmem:[%s1 + $0x80] sm:$0xff]
  %v53 = vld [vmem:[%s1 + $0x88] sm:$0xff]
  %v54 = vld [vmem:[%s1 + $0x90] sm:$0xff]
  %v55 = vld [vmem:[%s1 + $0x98] sm:$0xff]
  %v56 = vld [vmem:[%s1 + $0xa0] sm:$0xff]
  %v57 = vld [vmem:[%s1 + $0xa8] sm:$0xff]
  %v58 = vld [vmem:[%s1 + $0xb0] sm:$0xff]
  %v59 = vld [vmem:[%s1 + $0xb8] sm:$0xff]
  %v60 = vld [vmem:[%s1 + $0xc0] sm:$0xff]
  %v61 = vld [vmem:[%s1 + $0xc8] sm:$0xff]
  %v62 = vld [vmem:[%s1 + $0xd0] sm:$0xff]
  %v63 = vld [vmem:[%s1 + $0xd8] sm:$0xff]
  %v64 = vld [vmem:[%s1 + $0xe0] sm:$0xff]
  %v65 = vld [vmem:[%s1 + $0xe8] sm:$0xff]
  %v66 = vld [vmem:[%s1 + $0xf0] sm:$0xff]
  %v67 = vld [vmem:[%s1 + $0xf8] sm:$0xff]
  %v68 = vld [vmem:[%s2] sm:$0xf]
  %v70 = vperm.slane %v68, 0
  %v71 = vperm.slane %v68, 1
  %v72 = vperm.slane %v68, 2
  %v73 = vperm.slane %v68, 3
  %v100 = vunpack.c.l.b16 %v14
  %v101 = vunpack.c.l.b16 %v15
  %v102 = vunpack.c.l.b16 %v16
  %v103 = vunpack.c.l.b16 %v17
  %v104 = vunpack.c.l.b16 %v18
  %v105 = vunpack.c.l.b16 %v19
  %v106 = vunpack.c.l.b16 %v20
  %v107 = vunpack.c.l.b16 %v21
  %v108 = vunpack.c.l.b16 %v22
  %v109 = vunpack.c.l.b16 %v23
  %v110 = vunpack.c.l.b16 %v24
  %v111 = vunpack.c.l.b16 %v25
  %v112 = vunpack.c.l.b16 %v26
  %v113 = vunpack.c.l.b16 %v27
  %v114 = vunpack.c.l.b16 %v28
  %v115 = vunpack.c.l.b16 %v29
  %v116 = vunpack.c.l.b16 %v30
  %v117 = vunpack.c.l.b16 %v31
  %v118 = vunpack.c.l.b16 %v32
  %v119 = vunpack.c.l.b16 %v33
  %v120 = vunpack.c.l.b16 %v34
  %v121 = vunpack.c.l.b16 %v35
  %v122 = vpack.c.b16 %v101, %v100
  %v123 = vpack.c.b16 %v103, %v102
  %v124 = vpack.c.b16 %v105, %v104
  %v125 = vpack.c.b16 %v107, %v106
  %v126 = vpack.c.b16 %v109, %v108
  %v127 = vpack.c.b16 %v111, %v110
  %v128 = vpack.c.b16 %v113, %v112
  %v129 = vpack.c.b16 %v115, %v114
  %v130 = vpack.c.b16 %v117, %v116
  %v131 = vpack.c.b16 %v119, %v118
  %v132 = vpack.c.b16 %v121, %v120
  %v176 = vunpack.c.l.b16 %v36
  %v177 = vunpack.c.h.b16 %v36
  %v178 = vunpack.c.l.b16 %v37
  %v179 = vunpack.c.h.b16 %v37
  %v180 = vunpack.c.l.b16 %v38
  %v181 = vunpack.c.h.b16 %v38
  %v182 = vunpack.c.l.b16 %v39
  %v183 = vunpack.c.h.b16 %v39
  %v184 = vunpack.c.l.b16 %v40
  %v185 = vunpack.c.h.b16 %v40
  %v186 = vunpack.c.l.b16 %v41
  %v187 = vunpack.c.h.b16 %v41
  %v188 = vunpack.c.l.b16 %v42
  %v189 = vunpack.c.h.b16 %v42
  %v190 = vunpack.c.l.b16 %v43
  %v191 = vunpack.c.h.b16 %v43
  %v192 = vunpack.c.l.b16 %v44
  %v193 = vunpack.c.h.b16 %v44
  %v194 = vunpack.c.l.b16 %v45
  %v195 = vunpack.c.h.b16 %v45
  %v196 = vunpack.c.l.b16 %v46
  %v197 = vunpack.c.h.b16 %v46
  %v198 = vunpack.c.l.b16 %v47
  %v199 = vunpack.c.h.b16 %v47
  %v200 = vunpack.c.l.b16 %v48
  %v201 = vunpack.c.h.b16 %v48
  %v202 = vunpack.c.l.b16 %v49
  %v203 = vunpack.c.h.b16 %v49
  %v204 = vunpack.c.l.b16 %v50
  %v205 = vunpack.c.h.b16 %v50
  %v206 = vunpack.c.l.b16 %v51
  %v207 = vunpack.c.h.b16 %v51
  %v208 = vunpack.c.l.b16 %v52
  %v209 = vunpack.c.h.b16 %v52
  %v210 = vunpack.c.l.b16 %v53
  %v211 = vunpack.c.h.b16 %v53
  %v212 = vunpack.c.l.b16 %v54
  %v213 = vunpack.c.h.b16 %v54
  %v214 = vunpack.c.l.b16 %v55
  %v215 = vunpack.c.h.b16 %v55
  %v216 = vunpack.c.l.b16 %v56
  %v217 = vunpack.c.h.b16 %v56
  %v218 = vunpack.c.l.b16 %v57
  %v219 = vunpack.c.h.b16 %v57
  %v220 = vunpack.c.l.b16 %v58
  %v221 = vunpack.c.h.b16 %v58
  %v222 = vunpack.c.l.b16 %v59
  %v223 = vunpack.c.h.b16 %v59
  %v224 = vunpack.c.l.b16 %v60
  %v225 = vunpack.c.h.b16 %v60
  %v226 = vunpack.c.l.b16 %v61
  %v227 = vunpack.c.h.b16 %v61
  %v228 = vunpack.c.l.b16 %v62
  %v229 = vunpack.c.h.b16 %v62
  %v230 = vunpack.c.l.b16 %v63
  %v231 = vunpack.c.h.b16 %v63
  %v232 = vunpack.c.l.b16 %v64
  %v233 = vunpack.c.h.b16 %v64
  %v234 = vunpack.c.l.b16 %v65
  %v235 = vunpack.c.h.b16 %v65
  %v236 = vunpack.c.l.b16 %v66
  %v237 = vunpack.c.h.b16 %v66
  %v238 = vunpack.c.l.b16 %v67
  %v239 = vunpack.c.h.b16 %v67
  %v240 = vpack.c.b16 %v180, %v176
  %v241 = vpack.c.b16 %v181, %v177
  %v242 = vpack.c.b16 %v182, %v178
  %v243 = vpack.c.b16 %v183, %v179
  %v244 = vpack.c.b16 %v188, %v184
  %v245 = vpack.c.b16 %v189, %v185
  %v246 = vpack.c.b16 %v190, %v186
  %v247 = vpack.c.b16 %v191, %v187
  %v248 = vpack.c.b16 %v196, %v192
  %v249 = vpack.c.b16 %v197, %v193
  %v250 = vpack.c.b16 %v198, %v194
  %v251 = vpack.c.b16 %v199, %v195
  %v252 = vpack.c.b16 %v204, %v200
  %v253 = vpack.c.b16 %v205, %v201
  %v254 = vpack.c.b16 %v206, %v202
  %v255 = vpack.c.b16 %v207, %v203
  %v256 = vpack.c.b16 %v212, %v208
  %v257 = vpack.c.b16 %v213, %v209
  %v258 = vpack.c.b16 %v214, %v210
  %v259 = vpack.c.b16 %v215, %v211
  %v260 = vpack.c.b16 %v220, %v216
  %v261 = vpack.c.b16 %v221, %v217
  %v262 = vpack.c.b16 %v222, %v218
  %v263 = vpack.c.b16 %v223, %v219
  %v264 = vpack.c.b16 %v228, %v224
  %v265 = vpack.c.b16 %v229, %v225
  %v266 = vpack.c.b16 %v230, %v226
  %v267 = vpack.c.b16 %v231, %v227
  %v268 = vpack.c.b16 %v236, %v232
  %v269 = vpack.c.b16 %v237, %v233
  %v270 = vpack.c.b16 %v238, %v234
  %v271 = vpack.c.b16 %v239, %v235
  %304 = vmatpush.bf16.msra.mxu0 %v268
  %305 = vmatpush.bf16.msra.mxu0 %v264
  %306 = vmatpush.bf16.msra.mxu0 %v260
  %307 = vmatpush.bf16.msra.mxu0 %v256
  %308 = vmatpush.bf16.msra.mxu0 %v252
  %309 = vmatpush.bf16.msra.mxu0 %v248
  %310 = vmatpush.bf16.msra.mxu0 %v244
  %311 = vmatpush.bf16.msra.mxu0 %v240
  %312 = vmatmul.bf16.gmra.mxu0 %v122
  %v313 = vpop.f32.mrf.mxu0
  %v314 = vadd.f32 %v70, %v313
  %v315 = vpop.f32.mrf.mxu0
  %v316 = vadd.f32 %v70, %v315
  %317 = vmatmul.bf16.gmra.mxu0 %v123
  %v318 = vpop.f32.mrf.mxu0
  %v319 = vadd.f32 %v70, %v318
  %v320 = vpop.f32.mrf.mxu0
  %v321 = vadd.f32 %v70, %v320
  %322 = vmatmul.bf16.gmra.mxu0 %v124
  %v323 = vpop.f32.mrf.mxu0
  %v324 = vadd.f32 %v70, %v323
  %v325 = vpop.f32.mrf.mxu0
  %v326 = vadd.f32 %v70, %v325
  %327 = vmatmul.bf16.gmra.mxu0 %v125
  %v328 = vpop.f32.mrf.mxu0
  %v329 = vadd.f32 %v70, %v328
  %v330 = vpop.f32.mrf.mxu0
  %v331 = vadd.f32 %v70, %v330
  %332 = vmatmul.bf16.gmra.mxu0 %v126
  %v333 = vpop.f32.mrf.mxu0
  %v334 = vadd.f32 %v70, %v333
  %v335 = vpop.f32.mrf.mxu0
  %v336 = vadd.f32 %v70, %v335
  %337 = vmatmul.bf16.gmra.mxu0 %v127
  %v338 = vpop.f32.mrf.mxu0
  %v339 = vadd.f32 %v70, %v338
  %v340 = vpop.f32.mrf.mxu0
  %v341 = vadd.f32 %v70, %v340
  %342 = vmatmul.bf16.gmra.mxu0 %v128
  %v343 = vpop.f32.mrf.mxu0
  %v344 = vadd.f32 %v70, %v343
  %v345 = vpop.f32.mrf.mxu0
  %v346 = vadd.f32 %v70, %v345
  %347 = vmatmul.bf16.gmra.mxu0 %v129
  %v348 = vpop.f32.mrf.mxu0
  %v349 = vadd.f32 %v70, %v348
  %v350 = vpop.f32.mrf.mxu0
  %v351 = vadd.f32 %v70, %v350
  %352 = vmatmul.bf16.gmra.mxu0 %v130
  %v353 = vpop.f32.mrf.mxu0
  %v354 = vadd.f32 %v70, %v353
  %v355 = vpop.f32.mrf.mxu0
  %v356 = vadd.f32 %v70, %v355
  %357 = vmatmul.bf16.gmra.mxu0 %v131
  %v358 = vpop.f32.mrf.mxu0
  %v359 = vadd.f32 %v70, %v358
  %v360 = vpop.f32.mrf.mxu0
  %v361 = vadd.f32 %v70, %v360
  %362 = vmatmul.bf16.gmra.mxu0 %v132
  %v363 = vpop.f32.mrf.mxu0
  %v364 = vadd.f32 %v70, %v363
  %v365 = vpop.f32.mrf.mxu0
  %v366 = vadd.f32 %v70, %v365
  %367 = vdwg.mxu0
  %368 = vmatpush.bf16.msra.mxu0 %v269
  %369 = vmatpush.bf16.msra.mxu0 %v265
  %370 = vmatpush.bf16.msra.mxu0 %v261
  %371 = vmatpush.bf16.msra.mxu0 %v257
  %372 = vmatpush.bf16.msra.mxu0 %v253
  %373 = vmatpush.bf16.msra.mxu0 %v249
  %374 = vmatpush.bf16.msra.mxu0 %v245
  %375 = vmatpush.bf16.msra.mxu0 %v241
  %376 = vmatmul.bf16.gmra.mxu0 %v122
  %v377 = vpop.f32.mrf.mxu0
  %v378 = vadd.f32 %v71, %v377
  %v379 = vpop.f32.mrf.mxu0
  %v380 = vadd.f32 %v71, %v379
  %381 = vmatmul.bf16.gmra.mxu0 %v123
  %v382 = vpop.f32.mrf.mxu0
  %v383 = vadd.f32 %v71, %v382
  %v384 = vpop.f32.mrf.mxu0
  %v385 = vadd.f32 %v71, %v384
  %386 = vmatmul.bf16.gmra.mxu0 %v124
  %v387 = vpop.f32.mrf.mxu0
  %v388 = vadd.f32 %v71, %v387
  %v389 = vpop.f32.mrf.mxu0
  %v390 = vadd.f32 %v71, %v389
  %391 = vmatmul.bf16.gmra.mxu0 %v125
  %v392 = vpop.f32.mrf.mxu0
  %v393 = vadd.f32 %v71, %v392
  %v394 = vpop.f32.mrf.mxu0
  %v395 = vadd.f32 %v71, %v394
  %396 = vmatmul.bf16.gmra.mxu0 %v126
  %v397 = vpop.f32.mrf.mxu0
  %v398 = vadd.f32 %v71, %v397
  %v399 = vpop.f32.mrf.mxu0
  %v400 = vadd.f32 %v71, %v399
  %401 = vmatmul.bf16.gmra.mxu0 %v127
  %v402 = vpop.f32.mrf.mxu0
  %v403 = vadd.f32 %v71, %v402
  %v404 = vpop.f32.mrf.mxu0
  %v405 = vadd.f32 %v71, %v404
  %406 = vmatmul.bf16.gmra.mxu0 %v128
  %v407 = vpop.f32.mrf.mxu0
  %v408 = vadd.f32 %v71, %v407
  %v409 = vpop.f32.mrf.mxu0
  %v410 = vadd.f32 %v71, %v409
  %411 = vmatmul.bf16.gmra.mxu0 %v129
  %v412 = vpop.f32.mrf.mxu0
  %v413 = vadd.f32 %v71, %v412
  %v414 = vpop.f32.mrf.mxu0
  %v415 = vadd.f32 %v71, %v414
  %416 = vmatmul.bf16.gmra.mxu0 %v130
  %v417 = vpop.f32.mrf.mxu0
  %v418 = vadd.f32 %v71, %v417
  %v419 = vpop.f32.mrf.mxu0
  %v420 = vadd.f32 %v71, %v419
  %421 = vmatmul.bf16.gmra.mxu0 %v131
  %v422 = vpop.f32.mrf.mxu0
  %v423 = vadd.f32 %v71, %v422
  %v424 = vpop.f32.mrf.mxu0
  %v425 = vadd.f32 %v71, %v424
  %426 = vmatmul.bf16.gmra.mxu0 %v132
  %v427 = vpop.f32.mrf.mxu0
  %v428 = vadd.f32 %v71, %v427
  %v429 = vpop.f32.mrf.mxu0
  %v430 = vadd.f32 %v71, %v429
  %431 = vdwg.mxu0
  %432 = vmatpush.bf16.msra.mxu0 %v270
  %433 = vmatpush.bf16.msra.mxu0 %v266
  %434 = vmatpush.bf16.msra.mxu0 %v262
  %435 = vmatpush.bf16.msra.mxu0 %v258
  %436 = vmatpush.bf16.msra.mxu0 %v254
  %437 = vmatpush.bf16.msra.mxu0 %v250
  %438 = vmatpush.bf16.msra.mxu0 %v246
  %439 = vmatpush.bf16.msra.mxu0 %v242
  %440 = vmatmul.bf16.gmra.mxu0 %v122
  %v441 = vpop.f32.mrf.mxu0
  %v442 = vadd.f32 %v72, %v441
  %v443 = vpop.f32.mrf.mxu0
  %v444 = vadd.f32 %v72, %v443
  %445 = vmatmul.bf16.gmra.mxu0 %v123
  %v446 = vpop.f32.mrf.mxu0
  %v447 = vadd.f32 %v72, %v446
  %v448 = vpop.f32.mrf.mxu0
  %v449 = vadd.f32 %v72, %v448
  %450 = vmatmul.bf16.gmra.mxu0 %v124
  %v451 = vpop.f32.mrf.mxu0
  %v452 = vadd.f32 %v72, %v451
  %v453 = vpop.f32.mrf.mxu0
  %v454 = vadd.f32 %v72, %v453
  %455 = vmatmul.bf16.gmra.mxu0 %v125
  %v456 = vpop.f32.mrf.mxu0
  %v457 = vadd.f32 %v72, %v456
  %v458 = vpop.f32.mrf.mxu0
  %v459 = vadd.f32 %v72, %v458
  %460 = vmatmul.bf16.gmra.mxu0 %v126
  %v461 = vpop.f32.mrf.mxu0
  %v462 = vadd.f32 %v72, %v461
  %v463 = vpop.f32.mrf.mxu0
  %v464 = vadd.f32 %v72, %v463
  %465 = vmatmul.bf16.gmra.mxu0 %v127
  %v466 = vpop.f32.mrf.mxu0
  %v467 = vadd.f32 %v72, %v466
  %v468 = vpop.f32.mrf.mxu0
  %v469 = vadd.f32 %v72, %v468
  %470 = vmatmul.bf16.gmra.mxu0 %v128
  %v471 = vpop.f32.mrf.mxu0
  %v472 = vadd.f32 %v72, %v471
  %v473 = vpop.f32.mrf.mxu0
  %v474 = vadd.f32 %v72, %v473
  %475 = vmatmul.bf16.gmra.mxu0 %v129
  %v476 = vpop.f32.mrf.mxu0
  %v477 = vadd.f32 %v72, %v476
  %v478 = vpop.f32.mrf.mxu0
  %v479 = vadd.f32 %v72, %v478
  %480 = vmatmul.bf16.gmra.mxu0 %v130
  %v481 = vpop.f32.mrf.mxu0
  %v482 = vadd.f32 %v72, %v481
  %v483 = vpop.f32.mrf.mxu0
  %v484 = vadd.f32 %v72, %v483
  %485 = vmatmul.bf16.gmra.mxu0 %v131
  %v486 = vpop.f32.mrf.mxu0
  %v487 = vadd.f32 %v72, %v486
  %v488 = vpop.f32.mrf.mxu0
  %v489 = vadd.f32 %v72, %v488
  %490 = vmatmul.bf16.gmra.mxu0 %v132
  %v491 = vpop.f32.mrf.mxu0
  %v492 = vadd.f32 %v72, %v491
  %v493 = vpop.f32.mrf.mxu0
  %v494 = vadd.f32 %v72, %v493
  %495 = vdwg.mxu0
  %496 = vmatpush.bf16.msra.mxu0 %v271
  %497 = vmatpush.bf16.msra.mxu0 %v267
  %498 = vmatpush.bf16.msra.mxu0 %v263
  %499 = vmatpush.bf16.msra.mxu0 %v259
  %500 = vmatpush.bf16.msra.mxu0 %v255
  %501 = vmatpush.bf16.msra.mxu0 %v251
  %502 = vmatpush.bf16.msra.mxu0 %v247
  %503 = vmatpush.bf16.msra.mxu0 %v243
  %504 = vmatmul.bf16.gmra.mxu0 %v122
  %v505 = vpop.f32.mrf.mxu0
  %v506 = vadd.f32 %v73, %v505
  %v507 = vpop.f32.mrf.mxu0
  %v508 = vadd.f32 %v73, %v507
  %509 = vmatmul.bf16.gmra.mxu0 %v123
  %v510 = vpop.f32.mrf.mxu0
  %v511 = vadd.f32 %v73, %v510
  %v512 = vpop.f32.mrf.mxu0
  %v513 = vadd.f32 %v73, %v512
  %514 = vmatmul.bf16.gmra.mxu0 %v124
  %v515 = vpop.f32.mrf.mxu0
  %v516 = vadd.f32 %v73, %v515
  %v517 = vpop.f32.mrf.mxu0
  %v518 = vadd.f32 %v73, %v517
  %519 = vmatmul.bf16.gmra.mxu0 %v125
  %v520 = vpop.f32.mrf.mxu0
  %v521 = vadd.f32 %v73, %v520
  %v522 = vpop.f32.mrf.mxu0
  %v523 = vadd.f32 %v73, %v522
  %524 = vmatmul.bf16.gmra.mxu0 %v126
  %v525 = vpop.f32.mrf.mxu0
  %v526 = vadd.f32 %v73, %v525
  %v527 = vpop.f32.mrf.mxu0
  %v528 = vadd.f32 %v73, %v527
  %529 = vmatmul.bf16.gmra.mxu0 %v127
  %v530 = vpop.f32.mrf.mxu0
  %v531 = vadd.f32 %v73, %v530
  %v532 = vpop.f32.mrf.mxu0
  %v533 = vadd.f32 %v73, %v532
  %534 = vmatmul.bf16.gmra.mxu0 %v128
  %v535 = vpop.f32.mrf.mxu0
  %v536 = vadd.f32 %v73, %v535
  %v537 = vpop.f32.mrf.mxu0
  %v538 = vadd.f32 %v73, %v537
  %539 = vmatmul.bf16.gmra.mxu0 %v129
  %v540 = vpop.f32.mrf.mxu0
  %v541 = vadd.f32 %v73, %v540
  %v542 = vpop.f32.mrf.mxu0
  %v543 = vadd.f32 %v73, %v542
  %544 = vmatmul.bf16.gmra.mxu0 %v130
  %v545 = vpop.f32.mrf.mxu0
  %v546 = vadd.f32 %v73, %v545
  %v547 = vpop.f32.mrf.mxu0
  %v548 = vadd.f32 %v73, %v547
  %549 = vmatmul.bf16.gmra.mxu0 %v131
  %v550 = vpop.f32.mrf.mxu0
  %v551 = vadd.f32 %v73, %v550
  %v552 = vpop.f32.mrf.mxu0
  %v553 = vadd.f32 %v73, %v552
  %554 = vmatmul.bf16.gmra.mxu0 %v132
  %v555 = vpop.f32.mrf.mxu0
  %v556 = vadd.f32 %v73, %v555
  %v557 = vpop.f32.mrf.mxu0
  %v558 = vadd.f32 %v73, %v557
  %559 = vdwg.mxu0
  %v560 = vtanh.pop %v314
  %v561 = vtanh.pop %v378
  %v562 = vtanh.pop %v442
  %v563 = vtanh.pop %v506
  %v564 = vtanh.pop %v316
  %v565 = vtanh.pop %v380
  %v566 = vtanh.pop %v444
  %v567 = vtanh.pop %v508
  %v568 = vtanh.pop %v319
  %v569 = vtanh.pop %v383
  %v570 = vtanh.pop %v447
  %v571 = vtanh.pop %v511
  %v572 = vtanh.pop %v321
  %v573 = vtanh.pop %v385
  %v574 = vtanh.pop %v449
  %v575 = vtanh.pop %v513
  %v576 = vtanh.pop %v324
  %v577 = vtanh.pop %v388
  %v578 = vtanh.pop %v452
  %v579 = vtanh.pop %v516
  %v580 = vtanh.pop %v326
  %v581 = vtanh.pop %v390
  %v582 = vtanh.pop %v454
  %v583 = vtanh.pop %v518
  %v584 = vtanh.pop %v329
  %v585 = vtanh.pop %v393
  %v586 = vtanh.pop %v457
  %v587 = vtanh.pop %v521
  %v588 = vtanh.pop %v331
  %v589 = vtanh.pop %v395
  %v590 = vtanh.pop %v459
  %v591 = vtanh.pop %v523
  %v592 = vtanh.pop %v334
  %v593 = vtanh.pop %v398
  %v594 = vtanh.pop %v462
  %v595 = vtanh.pop %v526
  %v596 = vtanh.pop %v336
  %v597 = vtanh.pop %v400
  %v598 = vtanh.pop %v464
  %v599 = vtanh.pop %v528
  %v600 = vtanh.pop %v339
  %v601 = vtanh.pop %v403
  %v602 = vtanh.pop %v467
  %v603 = vtanh.pop %v531
  %v604 = vtanh.pop %v341
  %v605 = vtanh.pop %v405
  %v606 = vtanh.pop %v469
  %v607 = vtanh.pop %v533
  %v608 = vtanh.pop %v344
  %v609 = vtanh.pop %v408
  %v610 = vtanh.pop %v472
  %v611 = vtanh.pop %v536
  %v612 = vtanh.pop %v346
  %v613 = vtanh.pop %v410
  %v614 = vtanh.pop %v474
  %v615 = vtanh.pop %v538
  %v616 = vtanh.pop %v349
  %v617 = vtanh.pop %v413
  %v618 = vtanh.pop %v477
  %v619 = vtanh.pop %v541
  %v620 = vtanh.pop %v351
  %v621 = vtanh.pop %v415
  %v622 = vtanh.pop %v479
  %v623 = vtanh.pop %v543
  %v624 = vtanh.pop %v354
  %v625 = vtanh.pop %v418
  %v626 = vtanh.pop %v482
  %v627 = vtanh.pop %v546
  %v628 = vtanh.pop %v356
  %v629 = vtanh.pop %v420
  %v630 = vtanh.pop %v484
  %v631 = vtanh.pop %v548
  %v632 = vtanh.pop %v359
  %v633 = vtanh.pop %v423
  %v634 = vtanh.pop %v487
  %v635 = vtanh.pop %v551
  %v636 = vtanh.pop %v361
  %v637 = vtanh.pop %v425
  %v638 = vtanh.pop %v489
  %v639 = vtanh.pop %v553
  %v640 = vtanh.pop %v364
  %v641 = vtanh.pop %v428
  %v642 = vtanh.pop %v492
  %v643 = vtanh.pop %v556
  %v644 = vtanh.pop %v366
  %v645 = vtanh.pop %v430
  %v646 = vtanh.pop %v494
  %v647 = vtanh.pop %v558
  %648 = vst [vmem:[%s3] sm:$0xff] %v560
  %649 = vst [vmem:[%s3 + $0x8] sm:$0xff] %v561
  %650 = vst [vmem:[%s3 + $0x10] sm:$0xff] %v562
  %651 = vst [vmem:[%s3 + $0x18] sm:$0xff] %v563
  %652 = vst [vmem:[%s3 + $0x20] sm:$0xff] %v564
  %653 = vst [vmem:[%s3 + $0x28] sm:$0xff] %v565
  %654 = vst [vmem:[%s3 + $0x30] sm:$0xff] %v566
  %655 = vst [vmem:[%s3 + $0x38] sm:$0xff] %v567
  %656 = vst [vmem:[%s3 + $0x40] sm:$0xff] %v568
  %657 = vst [vmem:[%s3 + $0x48] sm:$0xff] %v569
  %658 = vst [vmem:[%s3 + $0x50] sm:$0xff] %v570
  %659 = vst [vmem:[%s3 + $0x58] sm:$0xff] %v571
  %660 = vst [vmem:[%s3 + $0x60] sm:$0xff] %v572
  %661 = vst [vmem:[%s3 + $0x68] sm:$0xff] %v573
  %662 = vst [vmem:[%s3 + $0x70] sm:$0xff] %v574
  %663 = vst [vmem:[%s3 + $0x78] sm:$0xff] %v575
  %664 = vst [vmem:[%s3 + $0x80] sm:$0xff] %v576
  %665 = vst [vmem:[%s3 + $0x88] sm:$0xff] %v577
  %666 = vst [vmem:[%s3 + $0x90] sm:$0xff] %v578
  %667 = vst [vmem:[%s3 + $0x98] sm:$0xff] %v579
  %668 = vst [vmem:[%s3 + $0xa0] sm:$0xff] %v580
  %669 = vst [vmem:[%s3 + $0xa8] sm:$0xff] %v581
  %670 = vst [vmem:[%s3 + $0xb0] sm:$0xff] %v582
  %671 = vst [vmem:[%s3 + $0xb8] sm:$0xff] %v583
  %672 = vst [vmem:[%s3 + $0xc0] sm:$0xff] %v584
  %673 = vst [vmem:[%s3 + $0xc8] sm:$0xff] %v585
  %674 = vst [vmem:[%s3 + $0xd0] sm:$0xff] %v586
  %675 = vst [vmem:[%s3 + $0xd8] sm:$0xff] %v587
  %676 = vst [vmem:[%s3 + $0xe0] sm:$0xff] %v588
  %677 = vst [vmem:[%s3 + $0xe8] sm:$0xff] %v589
  %678 = vst [vmem:[%s3 + $0xf0] sm:$0xff] %v590
  %679 = vst [vmem:[%s3 + $0xf8] sm:$0xff] %v591
  %680 = vst [vmem:[%s3 + $0x100] sm:$0xff] %v592
  %681 = vst [vmem:[%s3 + $0x108] sm:$0xff] %v593
  %682 = vst [vmem:[%s3 + $0x110] sm:$0xff] %v594
  %683 = vst [vmem:[%s3 + $0x118] sm:$0xff] %v595
  %684 = vst [vmem:[%s3 + $0x120] sm:$0xff] %v596
  %685 = vst [vmem:[%s3 + $0x128] sm:$0xff] %v597
  %686 = vst [vmem:[%s3 + $0x130] sm:$0xff] %v598
  %687 = vst [vmem:[%s3 + $0x138] sm:$0xff] %v599
  %688 = vst [vmem:[%s3 + $0x140] sm:$0xff] %v600
  %689 = vst [vmem:[%s3 + $0x148] sm:$0xff] %v601
  %690 = vst [vmem:[%s3 + $0x150] sm:$0xff] %v602
  %691 = vst [vmem:[%s3 + $0x158] sm:$0xff] %v603
  %692 = vst [vmem:[%s3 + $0x160] sm:$0xff] %v604
  %693 = vst [vmem:[%s3 + $0x168] sm:$0xff] %v605
  %694 = vst [vmem:[%s3 + $0x170] sm:$0xff] %v606
  %695 = vst [vmem:[%s3 + $0x178] sm:$0xff] %v607
  %696 = vst [vmem:[%s3 + $0x180] sm:$0xff] %v608
  %697 = vst [vmem:[%s3 + $0x188] sm:$0xff] %v609
  %698 = vst [vmem:[%s3 + $0x190] sm:$0xff] %v610
  %699 = vst [vmem:[%s3 + $0x198] sm:$0xff] %v611
  %700 = vst [vmem:[%s3 + $0x1a0] sm:$0xff] %v612
  %701 = vst [vmem:[%s3 + $0x1a8] sm:$0xff] %v613
  %702 = vst [vmem:[%s3 + $0x1b0] sm:$0xff] %v614
  %703 = vst [vmem:[%s3 + $0x1b8] sm:$0xff] %v615
  %704 = vst [vmem:[%s3 + $0x1c0] sm:$0xff] %v616
  %705 = vst [vmem:[%s3 + $0x1c8] sm:$0xff] %v617
  %706 = vst [vmem:[%s3 + $0x1d0] sm:$0xff] %v618
  %707 = vst [vmem:[%s3 + $0x1d8] sm:$0xff] %v619
  %708 = vst [vmem:[%s3 + $0x1e0] sm:$0xff] %v620
  %709 = vst [vmem:[%s3 + $0x1e8] sm:$0xff] %v621
  %710 = vst [vmem:[%s3 + $0x1f0] sm:$0xff] %v622
  %711 = vst [vmem:[%s3 + $0x1f8] sm:$0xff] %v623
  %712 = vst [vmem:[%s3 + $0x200] sm:$0xff] %v624
  %713 = vst [vmem:[%s3 + $0x208] sm:$0xff] %v625
  %714 = vst [vmem:[%s3 + $0x210] sm:$0xff] %v626
  %715 = vst [vmem:[%s3 + $0x218] sm:$0xff] %v627
  %716 = vst [vmem:[%s3 + $0x220] sm:$0xff] %v628
  %717 = vst [vmem:[%s3 + $0x228] sm:$0xff] %v629
  %718 = vst [vmem:[%s3 + $0x230] sm:$0xff] %v630
  %719 = vst [vmem:[%s3 + $0x238] sm:$0xff] %v631
  %720 = vst [vmem:[%s3 + $0x240] sm:$0xff] %v632
  %721 = vst [vmem:[%s3 + $0x248] sm:$0xff] %v633
  %722 = vst [vmem:[%s3 + $0x250] sm:$0xff] %v634
  %723 = vst [vmem:[%s3 + $0x258] sm:$0xff] %v635
  %724 = vst [vmem:[%s3 + $0x260] sm:$0xff] %v636
  %725 = vst [vmem:[%s3 + $0x268] sm:$0xff] %v637
  %726 = vst [vmem:[%s3 + $0x270] sm:$0xff] %v638
  %727 = vst [vmem:[%s3 + $0x278] sm:$0xff] %v639
  %728 = vst [vmem:[%s3 + $0x280] sm:$0xff] %v640
  %729 = vst [vmem:[%s3 + $0x288] sm:$0xff] %v641
  %730 = vst [vmem:[%s3 + $0x290] sm:$0xff] %v642
  %731 = vst [vmem:[%s3 + $0x298] sm:$0xff] %v643
  %732 = vst [vmem:[%s3 + $0x2a0] sm:$0xff] %v644
  %733 = vst [vmem:[%s3 + $0x2a8] sm:$0xff] %v645
  %734 = vst [vmem:[%s3 + $0x2b0] sm:$0xff] %v646
  %735 = vst [vmem:[%s3 + $0x2b8] sm:$0xff] %v647
  // Predicated region
  $region14: #{_lambda_.11} parent=0 // pred_check
    _
  $region15: #{_lambda_.11} parent=0 // pred_check_branch
    %737 = sbr.rel (0) target = $region17
  $region16: #{_lambda_.11} parent=0 // pred_region
    _
  $region17: #{_lambda_.11} parent=0 // pred_fallthru
    _
  // Predicated region
  $region18: #{_lambda_.11} parent=0 // pred_check
    _
  $region19: #{_lambda_.11} parent=0 // pred_check_branch
    %739 = sbr.rel (0) target = $region21
  $region20: #{_lambda_.11} parent=0 // pred_region
    _
  $region21: #{_lambda_.11} parent=0 // pred_fallthru
    _

</llo_original>
